<compile_context>
chip_gen: v7x
topology: tpu7x:2x2x1
jax: 0.10.0
libtpu: 0.0.40
codegen_flags: <defaults>
</compile_context>

<pallas_src>
import functools

import jax
import jax.numpy as jnp
from jax.experimental import pallas as pl
from jax.experimental.pallas import tpu as pltpu

# ----------------------------- model config ---------------------------------
B = 2          # batch
S = 8          # sequence length
D = 32         # d_model
H = 4          # nhead
HD = D // H    # head dim
FF = 64        # dim_feedforward
NUM_LAYERS = 2
LN_EPS = 1e-5


def _layernorm(y, g, b):
    mu = jnp.mean(y, axis=-1, keepdims=True)
    var = jnp.mean((y - mu) * (y - mu), axis=-1, keepdims=True)
    return (y - mu) * jax.lax.rsqrt(var + LN_EPS) * g + b


# ------------------------------ Pallas kernel -------------------------------
def encoder_kernel(x_ref, wqkv_ref, bqkv_ref, wo_ref, w1_ref, b1_ref,
                   w2_ref, vec_ref, o_ref, *, num_layers, nb, seq, d_model,
                   nhead):
    hd = d_model // nhead

    wqkv = wqkv_ref[...]                # (D, 3D)   (1/sqrt(HD) folded into Wq cols)
    bqkv = bqkv_ref[...]                # (1, 3D)   (bk columns zeroed: dead work)
    wo = wo_ref[...]                    # (D, D)    original output projection
    w1 = w1_ref[...]                    # (D, FF)
    b1 = b1_ref[...]                    # (1, FF)
    w2 = w2_ref[...]                    # (FF, D)
    vec = vec_ref[...]                  # (6, D): rows = bo, b2, g1, be1, g2, be2
    bo, b2 = vec[0:1], vec[1:2]
    g1, be1 = vec[2:3], vec[3:4]
    g2, be2 = vec[4:5], vec[5:6]

    def layer_body(_, xc):              # xc: (nb*seq, D) carry
        # ---- fused QKV projection over the whole row slab ----
        qkv = jnp.dot(xc, wqkv, preferred_element_type=jnp.float32) + bqkv
        # Slice once at D (32-lane) boundaries, leading-dim reshape only.
        q3 = qkv[:, :d_model].reshape(nb, seq, d_model)
        k3 = qkv[:, d_model:2 * d_model].reshape(nb, seq, d_model)
        v3 = qkv[:, 2 * d_model:].reshape(nb, seq, d_model)

        # ---- multi-head self attention (3-D batched einsums per head) ----
        ctx_heads = []
        for h in range(nhead):          # static loop over heads
            lo, hi = h * hd, (h + 1) * hd
            sc = jnp.einsum('bqd,bkd->bqk', q3[:, :, lo:hi], k3[:, :, lo:hi],
                            preferred_element_type=jnp.float32)   # (nb, S, S)
            sc = sc - jnp.max(sc, axis=-1, keepdims=True)
            p = jnp.exp(sc)
            p = p * pl.reciprocal(jnp.sum(p, axis=-1, keepdims=True),
                                  approx=True)
            ctx = jnp.einsum('bqk,bkd->bqd', p, v3[:, :, lo:hi],
                             preferred_element_type=jnp.float32)  # (nb, S, HD)
            ctx_heads.append(ctx.reshape(nb * seq, hd))
        # ONE output projection: all heads concatenated -> single K=D matmul.
        ctx2d = jnp.concatenate(ctx_heads, axis=-1)                # (nb*S, D)
        attn = jnp.dot(ctx2d, wo, preferred_element_type=jnp.float32) + bo

        # ---- residual + LayerNorm 1 ----
        x1 = _layernorm(xc + attn, g1, be1)

        # ---- feed-forward ----
        hdn = jnp.dot(x1, w1, preferred_element_type=jnp.float32) + b1
        hdn = jnp.maximum(hdn, 0.0)                                # ReLU
        ffo = jnp.dot(hdn, w2, preferred_element_type=jnp.float32) + b2

        # ---- residual + LayerNorm 2 ----
        return _layernorm(x1 + ffo, g2, be2)

    # Shared weights across layers (ModuleList of the same layer object).
    x = jax.lax.fori_loop(0, num_layers, layer_body, x_ref[...])
    o_ref[...] = x                                   # one lane-contiguous store


# ----------------------- one-time parameter packing --------------------------
def pack_params(params, nhead=H):
    """Hoisted out of the per-call jitted path; run once at load time."""
    (wq, bq, wk, bk, wv, bv, wo, bo, w1, b1, w2, b2, g1, be1, g2, be2) = params
    d = wq.shape[0]
    scale = float(d // nhead) ** -0.5
    wqkv = jnp.concatenate([wq * scale, wk, wv], axis=1)          # (D, 3D)
    # bk dropped: it only shifts each score row by a per-query constant that
    # softmax cancels exactly.
    bqkv = jnp.concatenate([bq * scale, jnp.zeros_like(bk), bv], axis=1)
    vec = jnp.concatenate([bo, b2, g1, be1, g2, be2], axis=0)     # (6, D)
    return (wqkv, bqkv, wo, w1, b1, w2, vec)


# ------------------------------- wrapper -------------------------------------
@functools.partial(jax.jit,
                   static_argnames=("num_layers", "nhead", "grid_over_batch"))
def transformer_encoder(x, packed, num_layers=NUM_LAYERS, nhead=H,
                        grid_over_batch=False):
    wqkv, bqkv, wo, w1, b1, w2, vec = packed
    b, s, d = x.shape
    ff = w1.shape[1]
    x2d = x.reshape(b * s, d)

    if grid_over_batch:
        # v7x path: shard the independent sequences across the 2 TensorCores.
        kern = functools.partial(encoder_kernel, num_layers=num_layers,
                                 nb=1, seq=s, d_model=d, nhead=nhead)

        def full(shape):
            return pl.BlockSpec(shape, lambda i, _shape=shape: (0,) * len(_shape))

        out2d = pl.pallas_call(
            kern,
            out_shape=jax.ShapeDtypeStruct((b * s, d), jnp.float32),
            grid=(b,),
            in_specs=[
                pl.BlockSpec((s, d), lambda i: (i, 0)),          # x rows per batch
                full((d, 3 * d)), full((1, 3 * d)), full((d, d)),
                full((d, ff)), full((1, ff)), full((ff, d)), full((6, d)),
            ],
            out_specs=pl.BlockSpec((s, d), lambda i: (i, 0)),
            compiler_params=pltpu.CompilerParams(
                dimension_semantics=("parallel",)),
        )(x2d, wqkv, bqkv, wo, w1, b1, w2, vec)
    else:
        # v5e / v6e path: single step, whole problem resident in VMEM.
        kern = functools.partial(encoder_kernel, num_layers=num_layers,
                                 nb=b, seq=s, d_model=d, nhead=nhead)
        vmem = pl.BlockSpec(memory_space=pltpu.MemorySpace.VMEM)
        out2d = pl.pallas_call(
            kern,
            out_shape=jax.ShapeDtypeStruct((b * s, d), jnp.float32),
            in_specs=[vmem] * 8,
            out_specs=vmem,
        )(x2d, wqkv, bqkv, wo, w1, b1, w2, vec)

    return out2d.reshape(b, s, d)


# ------------------------------ pure-JAX reference ---------------------------
def encoder_reference(x, params, num_layers=NUM_LAYERS):
    (wq, bq, wk, bk, wv, bv, wo, bo, w1, b1, w2, b2, g1, be1, g2, be2) = params
    scale = 1.0 / jnp.sqrt(jnp.float32(HD))
    for _ in range(num_layers):
        q = x @ wq + bq
        k = x @ wk + bk
        v = x @ wv + bv
        qh = q.reshape(B, S, H, HD).transpose(0, 2, 1, 3)
        kh = k.reshape(B, S, H, HD).transpose(0, 2, 1, 3)
        vh = v.reshape(B, S, H, HD).transpose(0, 2, 1, 3)
        s = jnp.einsum('bhqd,bhkd->bhqk', qh, kh) * scale
        p = jax.nn.softmax(s, axis=-1)
        ctx = jnp.einsum('bhqk,bhkd->bhqd', p, vh)
        ctx = ctx.transpose(0, 2, 1, 3).reshape(B, S, D)
        attn = ctx @ wo + bo
        x = _layernorm(x + attn, g1, be1)
        f = jnp.maximum(x @ w1 + b1, 0.0) @ w2 + b2
        x = _layernorm(x + f, g2, be2)
    return x


def init_params(key):
    ks = jax.random.split(key, 8)
    scale = 0.02
    wq = scale * jax.random.normal(ks[0], (D, D), jnp.float32)
    wk = scale * jax.random.normal(ks[1], (D, D), jnp.float32)
    wv = scale * jax.random.normal(ks[2], (D, D), jnp.float32)
    wo = scale * jax.random.normal(ks[3], (D, D), jnp.float32)
    w1 = scale * jax.random.normal(ks[4], (D, FF), jnp.float32)
    w2 = scale * jax.random.normal(ks[5], (FF, D), jnp.float32)
    bq = jnp.zeros((1, D), jnp.float32)
    bk = jnp.zeros((1, D), jnp.float32)
    bv = jnp.zeros((1, D), jnp.float32)
    bo = jnp.zeros((1, D), jnp.float32)
    b1 = jnp.zeros((1, FF), jnp.float32)
    b2 = jnp.zeros((1, D), jnp.float32)
    g1 = jnp.ones((1, D), jnp.float32)
    be1 = jnp.zeros((1, D), jnp.float32)
    g2 = jnp.ones((1, D), jnp.float32)
    be2 = jnp.zeros((1, D), jnp.float32)
    return (wq, bq, wk, bk, wv, bv, wo, bo, w1, b1, w2, b2, g1, be1, g2, be2)


if __name__ == "__main__":
    key = jax.random.PRNGKey(0)
    kx, kp = jax.random.split(key)
    x = jax.random.normal(kx, (B, S, D), jnp.float32)
    params = init_params(kp)
    packed = pack_params(params)          # one-time repack (hoisted from jit path)

    # Use the batch-parallel grid only on 2-TensorCore chips (v7x); gridless
    # single-step form elsewhere (v5e / v6e).
    device_kind = jax.devices()[0].device_kind.lower()
    grid_over_batch = "v7" in device_kind

    out = transformer_encoder(x, packed, num_layers=NUM_LAYERS, nhead=H,
                              grid_over_batch=grid_over_batch)
    out = jax.block_until_ready(out)
    assert out.shape == (B, S, D), out.shape
    assert bool(jnp.all(jnp.isfinite(out)))

    ref = encoder_reference(x, params, num_layers=NUM_LAYERS)
    assert jnp.allclose(out, ref, atol=2e-2, rtol=2e-2), float(
        jnp.max(jnp.abs(out - ref)))
    print("KERNEL_OK")
</pallas_src>

<mosaic_0001>
module attributes {stable_mosaic.version = 11 : i64} {
  func.func @encoder_kernel(%arg0: memref<16x32xf32, #tpu.memory_space<vmem>>, %arg1: memref<32x96xf32, #tpu.memory_space<vmem>>, %arg2: memref<1x96xf32, #tpu.memory_space<vmem>>, %arg3: memref<32x32xf32, #tpu.memory_space<vmem>>, %arg4: memref<32x64xf32, #tpu.memory_space<vmem>>, %arg5: memref<1x64xf32, #tpu.memory_space<vmem>>, %arg6: memref<64x32xf32, #tpu.memory_space<vmem>>, %arg7: memref<6x32xf32, #tpu.memory_space<vmem>>, %arg8: memref<16x32xf32, #tpu.memory_space<vmem>>) attributes {dimension_semantics = [], scalar_prefetch = 0 : i64, scratch_operands = 0 : i64, tpu.core_type = #tpu.core_type<tc>} {
    %c0 = arith.constant 0 : index
    %c0_0 = arith.constant 0 : index
    %0 = vector.load %arg1[%c0, %c0_0] : memref<32x96xf32, #tpu.memory_space<vmem>>, vector<32x96xf32>
    %c0_1 = arith.constant 0 : index
    %c0_2 = arith.constant 0 : index
    %1 = vector.load %arg2[%c0_1, %c0_2] : memref<1x96xf32, #tpu.memory_space<vmem>>, vector<1x96xf32>
    %c0_3 = arith.constant 0 : index
    %c0_4 = arith.constant 0 : index
    %2 = vector.load %arg3[%c0_3, %c0_4] : memref<32x32xf32, #tpu.memory_space<vmem>>, vector<32x32xf32>
    %c0_5 = arith.constant 0 : index
    %c0_6 = arith.constant 0 : index
    %3 = vector.load %arg4[%c0_5, %c0_6] : memref<32x64xf32, #tpu.memory_space<vmem>>, vector<32x64xf32>
    %c0_7 = arith.constant 0 : index
    %c0_8 = arith.constant 0 : index
    %4 = vector.load %arg5[%c0_7, %c0_8] : memref<1x64xf32, #tpu.memory_space<vmem>>, vector<1x64xf32>
    %c0_9 = arith.constant 0 : index
    %c0_10 = arith.constant 0 : index
    %5 = vector.load %arg6[%c0_9, %c0_10] : memref<64x32xf32, #tpu.memory_space<vmem>>, vector<64x32xf32>
    %c0_11 = arith.constant 0 : index
    %c0_12 = arith.constant 0 : index
    %6 = vector.load %arg7[%c0_11, %c0_12] : memref<6x32xf32, #tpu.memory_space<vmem>>, vector<6x32xf32>
    %7 = vector.extract_strided_slice %6 {offsets = [0, 0], sizes = [1, 32], strides = [1, 1]} : vector<6x32xf32> to vector<1x32xf32>
    %8 = vector.extract_strided_slice %6 {offsets = [1, 0], sizes = [1, 32], strides = [1, 1]} : vector<6x32xf32> to vector<1x32xf32>
    %9 = vector.extract_strided_slice %6 {offsets = [2, 0], sizes = [1, 32], strides = [1, 1]} : vector<6x32xf32> to vector<1x32xf32>
    %10 = vector.extract_strided_slice %6 {offsets = [3, 0], sizes = [1, 32], strides = [1, 1]} : vector<6x32xf32> to vector<1x32xf32>
    %11 = vector.extract_strided_slice %6 {offsets = [4, 0], sizes = [1, 32], strides = [1, 1]} : vector<6x32xf32> to vector<1x32xf32>
    %12 = vector.extract_strided_slice %6 {offsets = [5, 0], sizes = [1, 32], strides = [1, 1]} : vector<6x32xf32> to vector<1x32xf32>
    %c0_13 = arith.constant 0 : index
    %c0_14 = arith.constant 0 : index
    %13 = vector.load %arg0[%c0_13, %c0_14] : memref<16x32xf32, #tpu.memory_space<vmem>>, vector<16x32xf32>
    %c0_i32 = arith.constant 0 : i32
    %c2_i32 = arith.constant 2 : i32
    %14 = arith.addi %c0_i32, %c2_i32 : i32
    %c1_i32 = arith.constant 1 : i32
    %15 = scf.for %arg9 = %c0_i32 to %14 step %c1_i32 iter_args(%arg10 = %13) -> (vector<16x32xf32>)  : i32 {
      %cst = arith.constant dense<0.000000e+00> : vector<16x96xf32>
      %17 = tpu.matmul %arg10, %0, %cst {dimension_numbers = #tpu.dot_dimension_numbers<[1], [0], [0], [1], [0, 0, 1, 1], [], []>} : vector<16x32xf32>, vector<32x96xf32>, vector<16x96xf32> -> vector<16x96xf32>
      %18 = vector.broadcast %1 : vector<1x96xf32> to vector<16x96xf32>
      %19 = arith.addf %17, %18 : vector<16x96xf32>
      %20 = vector.extract_strided_slice %19 {offsets = [0, 0], sizes = [16, 32], strides = [1, 1]} : vector<16x96xf32> to vector<16x32xf32>
      %21 = vector.shape_cast %20 : vector<16x32xf32> to vector<2x8x32xf32>
      %22 = vector.extract_strided_slice %19 {offsets = [0, 32], sizes = [16, 32], strides = [1, 1]} : vector<16x96xf32> to vector<16x32xf32>
      %23 = vector.shape_cast %22 : vector<16x32xf32> to vector<2x8x32xf32>
      %24 = vector.extract_strided_slice %19 {offsets = [0, 64], sizes = [16, 32], strides = [1, 1]} : vector<16x96xf32> to vector<16x32xf32>
      %25 = vector.shape_cast %24 : vector<16x32xf32> to vector<2x8x32xf32>
      %26 = vector.extract_strided_slice %21 {offsets = [0, 0, 0], sizes = [2, 8, 8], strides = [1, 1, 1]} : vector<2x8x32xf32> to vector<2x8x8xf32>
      %27 = vector.extract_strided_slice %23 {offsets = [0, 0, 0], sizes = [2, 8, 8], strides = [1, 1, 1]} : vector<2x8x32xf32> to vector<2x8x8xf32>
      "tpu.trace_start"() <{level = 10 : i32, message = "bqd,bkd->bqk"}> : () -> ()
      %cst_17 = arith.constant dense<0.000000e+00> : vector<2x8x8xf32>
      %28 = tpu.matmul %26, %27, %cst_17 {dimension_numbers = #tpu.dot_dimension_numbers<[2], [2], [1], [1], [0, 0, 0, 1, 1, 1], [0], [0]>} : vector<2x8x8xf32>, vector<2x8x8xf32>, vector<2x8x8xf32> -> vector<2x8x8xf32>
      "tpu.trace_stop"() : () -> ()
      %cst_18 = arith.constant dense<0xFF800000> : vector<2x8xf32>
      %29 = vector.multi_reduction <maximumf>, %28, %cst_18 [2] : vector<2x8x8xf32> to vector<2x8xf32>
      %30 = vector.shape_cast %29 : vector<2x8xf32> to vector<2x8x1xf32>
      %31 = vector.broadcast %30 : vector<2x8x1xf32> to vector<2x8x8xf32>
      %32 = arith.subf %28, %31 : vector<2x8x8xf32>
      %33 = math.exp %32 : vector<2x8x8xf32>
      %cst_19 = arith.constant dense<0.000000e+00> : vector<2x8xf32>
      %34 = vector.multi_reduction <add>, %33, %cst_19 [2] : vector<2x8x8xf32> to vector<2x8xf32>
      %35 = vector.shape_cast %34 : vector<2x8xf32> to vector<2x8x1xf32>
      %36 = tpu.reciprocal %35 {approx = true} : vector<2x8x1xf32> -> vector<2x8x1xf32>
      %37 = vector.broadcast %36 : vector<2x8x1xf32> to vector<2x8x8xf32>
      %38 = arith.mulf %33, %37 : vector<2x8x8xf32>
      %39 = vector.extract_strided_slice %25 {offsets = [0, 0, 0], sizes = [2, 8, 8], strides = [1, 1, 1]} : vector<2x8x32xf32> to vector<2x8x8xf32>
      "tpu.trace_start"() <{level = 10 : i32, message = "bqk,bkd->bqd"}> : () -> ()
      %cst_20 = arith.constant dense<0.000000e+00> : vector<2x8x8xf32>
      %40 = tpu.matmul %38, %39, %cst_20 {dimension_numbers = #tpu.dot_dimension_numbers<[2], [1], [1], [2], [0, 0, 0, 1, 1, 2], [0], [0]>} : vector<2x8x8xf32>, vector<2x8x8xf32>, vector<2x8x8xf32> -> vector<2x8x8xf32>
      "tpu.trace_stop"() : () -> ()
      %41 = vector.shape_cast %40 : vector<2x8x8xf32> to vector<16x8xf32>
      %42 = vector.extract_strided_slice %21 {offsets = [0, 0, 8], sizes = [2, 8, 8], strides = [1, 1, 1]} : vector<2x8x32xf32> to vector<2x8x8xf32>
      %43 = vector.extract_strided_slice %23 {offsets = [0, 0, 8], sizes = [2, 8, 8], strides = [1, 1, 1]} : vector<2x8x32xf32> to vector<2x8x8xf32>
      "tpu.trace_start"() <{level = 10 : i32, message = "bqd,bkd->bqk"}> : () -> ()
      %cst_21 = arith.constant dense<0.000000e+00> : vector<2x8x8xf32>
      %44 = tpu.matmul %42, %43, %cst_21 {dimension_numbers = #tpu.dot_dimension_numbers<[2], [2], [1], [1], [0, 0, 0, 1, 1, 1], [0], [0]>} : vector<2x8x8xf32>, vector<2x8x8xf32>, vector<2x8x8xf32> -> vector<2x8x8xf32>
      "tpu.trace_stop"() : () -> ()
      %cst_22 = arith.constant dense<0xFF800000> : vector<2x8xf32>
      %45 = vector.multi_reduction <maximumf>, %44, %cst_22 [2] : vector<2x8x8xf32> to vector<2x8xf32>
      %46 = vector.shape_cast %45 : vector<2x8xf32> to vector<2x8x1xf32>
      %47 = vector.broadcast %46 : vector<2x8x1xf32> to vector<2x8x8xf32>
      %48 = arith.subf %44, %47 : vector<2x8x8xf32>
      %49 = math.exp %48 : vector<2x8x8xf32>
      %cst_23 = arith.constant dense<0.000000e+00> : vector<2x8xf32>
      %50 = vector.multi_reduction <add>, %49, %cst_23 [2] : vector<2x8x8xf32> to vector<2x8xf32>
      %51 = vector.shape_cast %50 : vector<2x8xf32> to vector<2x8x1xf32>
      %52 = tpu.reciprocal %51 {approx = true} : vector<2x8x1xf32> -> vector<2x8x1xf32>
      %53 = vector.broadcast %52 : vector<2x8x1xf32> to vector<2x8x8xf32>
      %54 = arith.mulf %49, %53 : vector<2x8x8xf32>
      %55 = vector.extract_strided_slice %25 {offsets = [0, 0, 8], sizes = [2, 8, 8], strides = [1, 1, 1]} : vector<2x8x32xf32> to vector<2x8x8xf32>
      "tpu.trace_start"() <{level = 10 : i32, message = "bqk,bkd->bqd"}> : () -> ()
      %cst_24 = arith.constant dense<0.000000e+00> : vector<2x8x8xf32>
      %56 = tpu.matmul %54, %55, %cst_24 {dimension_numbers = #tpu.dot_dimension_numbers<[2], [1], [1], [2], [0, 0, 0, 1, 1, 2], [0], [0]>} : vector<2x8x8xf32>, vector<2x8x8xf32>, vector<2x8x8xf32> -> vector<2x8x8xf32>
      "tpu.trace_stop"() : () -> ()
      %57 = vector.shape_cast %56 : vector<2x8x8xf32> to vector<16x8xf32>
      %58 = vector.extract_strided_slice %21 {offsets = [0, 0, 16], sizes = [2, 8, 8], strides = [1, 1, 1]} : vector<2x8x32xf32> to vector<2x8x8xf32>
      %59 = vector.extract_strided_slice %23 {offsets = [0, 0, 16], sizes = [2, 8, 8], strides = [1, 1, 1]} : vector<2x8x32xf32> to vector<2x8x8xf32>
      "tpu.trace_start"() <{level = 10 : i32, message = "bqd,bkd->bqk"}> : () -> ()
      %cst_25 = arith.constant dense<0.000000e+00> : vector<2x8x8xf32>
      %60 = tpu.matmul %58, %59, %cst_25 {dimension_numbers = #tpu.dot_dimension_numbers<[2], [2], [1], [1], [0, 0, 0, 1, 1, 1], [0], [0]>} : vector<2x8x8xf32>, vector<2x8x8xf32>, vector<2x8x8xf32> -> vector<2x8x8xf32>
      "tpu.trace_stop"() : () -> ()
      %cst_26 = arith.constant dense<0xFF800000> : vector<2x8xf32>
      %61 = vector.multi_reduction <maximumf>, %60, %cst_26 [2] : vector<2x8x8xf32> to vector<2x8xf32>
      %62 = vector.shape_cast %61 : vector<2x8xf32> to vector<2x8x1xf32>
      %63 = vector.broadcast %62 : vector<2x8x1xf32> to vector<2x8x8xf32>
      %64 = arith.subf %60, %63 : vector<2x8x8xf32>
      %65 = math.exp %64 : vector<2x8x8xf32>
      %cst_27 = arith.constant dense<0.000000e+00> : vector<2x8xf32>
      %66 = vector.multi_reduction <add>, %65, %cst_27 [2] : vector<2x8x8xf32> to vector<2x8xf32>
      %67 = vector.shape_cast %66 : vector<2x8xf32> to vector<2x8x1xf32>
      %68 = tpu.reciprocal %67 {approx = true} : vector<2x8x1xf32> -> vector<2x8x1xf32>
      %69 = vector.broadcast %68 : vector<2x8x1xf32> to vector<2x8x8xf32>
      %70 = arith.mulf %65, %69 : vector<2x8x8xf32>
      %71 = vector.extract_strided_slice %25 {offsets = [0, 0, 16], sizes = [2, 8, 8], strides = [1, 1, 1]} : vector<2x8x32xf32> to vector<2x8x8xf32>
      "tpu.trace_start"() <{level = 10 : i32, message = "bqk,bkd->bqd"}> : () -> ()
      %cst_28 = arith.constant dense<0.000000e+00> : vector<2x8x8xf32>
      %72 = tpu.matmul %70, %71, %cst_28 {dimension_numbers = #tpu.dot_dimension_numbers<[2], [1], [1], [2], [0, 0, 0, 1, 1, 2], [0], [0]>} : vector<2x8x8xf32>, vector<2x8x8xf32>, vector<2x8x8xf32> -> vector<2x8x8xf32>
      "tpu.trace_stop"() : () -> ()
      %73 = vector.shape_cast %72 : vector<2x8x8xf32> to vector<16x8xf32>
      %74 = vector.extract_strided_slice %21 {offsets = [0, 0, 24], sizes = [2, 8, 8], strides = [1, 1, 1]} : vector<2x8x32xf32> to vector<2x8x8xf32>
      %75 = vector.extract_strided_slice %23 {offsets = [0, 0, 24], sizes = [2, 8, 8], strides = [1, 1, 1]} : vector<2x8x32xf32> to vector<2x8x8xf32>
      "tpu.trace_start"() <{level = 10 : i32, message = "bqd,bkd->bqk"}> : () -> ()
      %cst_29 = arith.constant dense<0.000000e+00> : vector<2x8x8xf32>
      %76 = tpu.matmul %74, %75, %cst_29 {dimension_numbers = #tpu.dot_dimension_numbers<[2], [2], [1], [1], [0, 0, 0, 1, 1, 1], [0], [0]>} : vector<2x8x8xf32>, vector<2x8x8xf32>, vector<2x8x8xf32> -> vector<2x8x8xf32>
      "tpu.trace_stop"() : () -> ()
      %cst_30 = arith.constant dense<0xFF800000> : vector<2x8xf32>
      %77 = vector.multi_reduction <maximumf>, %76, %cst_30 [2] : vector<2x8x8xf32> to vector<2x8xf32>
      %78 = vector.shape_cast %77 : vector<2x8xf32> to vector<2x8x1xf32>
      %79 = vector.broadcast %78 : vector<2x8x1xf32> to vector<2x8x8xf32>
      %80 = arith.subf %76, %79 : vector<2x8x8xf32>
      %81 = math.exp %80 : vector<2x8x8xf32>
      %cst_31 = arith.constant dense<0.000000e+00> : vector<2x8xf32>
      %82 = vector.multi_reduction <add>, %81, %cst_31 [2] : vector<2x8x8xf32> to vector<2x8xf32>
      %83 = vector.shape_cast %82 : vector<2x8xf32> to vector<2x8x1xf32>
      %84 = tpu.reciprocal %83 {approx = true} : vector<2x8x1xf32> -> vector<2x8x1xf32>
      %85 = vector.broadcast %84 : vector<2x8x1xf32> to vector<2x8x8xf32>
      %86 = arith.mulf %81, %85 : vector<2x8x8xf32>
      %87 = vector.extract_strided_slice %25 {offsets = [0, 0, 24], sizes = [2, 8, 8], strides = [1, 1, 1]} : vector<2x8x32xf32> to vector<2x8x8xf32>
      "tpu.trace_start"() <{level = 10 : i32, message = "bqk,bkd->bqd"}> : () -> ()
      %cst_32 = arith.constant dense<0.000000e+00> : vector<2x8x8xf32>
      %88 = tpu.matmul %86, %87, %cst_32 {dimension_numbers = #tpu.dot_dimension_numbers<[2], [1], [1], [2], [0, 0, 0, 1, 1, 2], [0], [0]>} : vector<2x8x8xf32>, vector<2x8x8xf32>, vector<2x8x8xf32> -> vector<2x8x8xf32>
      "tpu.trace_stop"() : () -> ()
      %89 = vector.shape_cast %88 : vector<2x8x8xf32> to vector<16x8xf32>
      %90 = tpu.concatenate %41, %57, %73, %89 in 1 : vector<16x8xf32>, vector<16x8xf32>, vector<16x8xf32>, vector<16x8xf32> -> vector<16x32xf32>
      %cst_33 = arith.constant dense<0.000000e+00> : vector<16x32xf32>
      %91 = tpu.matmul %90, %2, %cst_33 {dimension_numbers = #tpu.dot_dimension_numbers<[1], [0], [0], [1], [0, 0, 1, 1], [], []>} : vector<16x32xf32>, vector<32x32xf32>, vector<16x32xf32> -> vector<16x32xf32>
      %92 = vector.broadcast %7 : vector<1x32xf32> to vector<16x32xf32>
      %93 = arith.addf %91, %92 : vector<16x32xf32>
      %94 = arith.addf %arg10, %93 : vector<16x32xf32>
      %cst_34 = arith.constant dense<0.000000e+00> : vector<16xf32>
      %95 = vector.multi_reduction <add>, %94, %cst_34 [1] : vector<16x32xf32> to vector<16xf32>
      %96 = vector.shape_cast %95 : vector<16xf32> to vector<16x1xf32>
      %cst_35 = arith.constant 3.200000e+01 : f32
      %97 = vector.broadcast %cst_35 : f32 to vector<16x1xf32>
      %98 = arith.divf %96, %97 : vector<16x1xf32>
      %99 = vector.broadcast %98 : vector<16x1xf32> to vector<16x32xf32>
      %100 = arith.subf %94, %99 : vector<16x32xf32>
      %101 = vector.broadcast %98 : vector<16x1xf32> to vector<16x32xf32>
      %102 = arith.subf %94, %101 : vector<16x32xf32>
      %103 = arith.mulf %100, %102 : vector<16x32xf32>
      %cst_36 = arith.constant dense<0.000000e+00> : vector<16xf32>
      %104 = vector.multi_reduction <add>, %103, %cst_36 [1] : vector<16x32xf32> to vector<16xf32>
      %105 = vector.shape_cast %104 : vector<16xf32> to vector<16x1xf32>
      %cst_37 = arith.constant 3.200000e+01 : f32
      %106 = vector.broadcast %cst_37 : f32 to vector<16x1xf32>
      %107 = arith.divf %105, %106 : vector<16x1xf32>
      %108 = vector.broadcast %98 : vector<16x1xf32> to vector<16x32xf32>
      %109 = arith.subf %94, %108 : vector<16x32xf32>
      %cst_38 = arith.constant 9.99999974E-6 : f32
      %110 = vector.broadcast %cst_38 : f32 to vector<16x1xf32>
      %111 = arith.addf %107, %110 : vector<16x1xf32>
      %112 = math.rsqrt %111 : vector<16x1xf32>
      %113 = vector.broadcast %112 : vector<16x1xf32> to vector<16x32xf32>
      %114 = arith.mulf %109, %113 : vector<16x32xf32>
      %115 = vector.broadcast %9 : vector<1x32xf32> to vector<16x32xf32>
      %116 = arith.mulf %114, %115 : vector<16x32xf32>
      %117 = vector.broadcast %10 : vector<1x32xf32> to vector<16x32xf32>
      %118 = arith.addf %116, %117 : vector<16x32xf32>
      %cst_39 = arith.constant dense<0.000000e+00> : vector<16x64xf32>
      %119 = tpu.matmul %118, %3, %cst_39 {dimension_numbers = #tpu.dot_dimension_numbers<[1], [0], [0], [1], [0, 0, 1, 1], [], []>} : vector<16x32xf32>, vector<32x64xf32>, vector<16x64xf32> -> vector<16x64xf32>
      %120 = vector.broadcast %4 : vector<1x64xf32> to vector<16x64xf32>
      %121 = arith.addf %119, %120 : vector<16x64xf32>
      %cst_40 = arith.constant 0.000000e+00 : f32
      %122 = vector.broadcast %cst_40 : f32 to vector<16x64xf32>
      %123 = arith.maximumf %121, %122 : vector<16x64xf32>
      %cst_41 = arith.constant dense<0.000000e+00> : vector<16x32xf32>
      %124 = tpu.matmul %123, %5, %cst_41 {dimension_numbers = #tpu.dot_dimension_numbers<[1], [0], [0], [1], [0, 0, 1, 1], [], []>} : vector<16x64xf32>, vector<64x32xf32>, vector<16x32xf32> -> vector<16x32xf32>
      %125 = vector.broadcast %8 : vector<1x32xf32> to vector<16x32xf32>
      %126 = arith.addf %124, %125 : vector<16x32xf32>
      %127 = arith.addf %118, %126 : vector<16x32xf32>
      %cst_42 = arith.constant dense<0.000000e+00> : vector<16xf32>
      %128 = vector.multi_reduction <add>, %127, %cst_42 [1] : vector<16x32xf32> to vector<16xf32>
      %129 = vector.shape_cast %128 : vector<16xf32> to vector<16x1xf32>
      %cst_43 = arith.constant 3.200000e+01 : f32
      %130 = vector.broadcast %cst_43 : f32 to vector<16x1xf32>
      %131 = arith.divf %129, %130 : vector<16x1xf32>
      %132 = vector.broadcast %131 : vector<16x1xf32> to vector<16x32xf32>
      %133 = arith.subf %127, %132 : vector<16x32xf32>
      %134 = vector.broadcast %131 : vector<16x1xf32> to vector<16x32xf32>
      %135 = arith.subf %127, %134 : vector<16x32xf32>
      %136 = arith.mulf %133, %135 : vector<16x32xf32>
      %cst_44 = arith.constant dense<0.000000e+00> : vector<16xf32>
      %137 = vector.multi_reduction <add>, %136, %cst_44 [1] : vector<16x32xf32> to vector<16xf32>
      %138 = vector.shape_cast %137 : vector<16xf32> to vector<16x1xf32>
      %cst_45 = arith.constant 3.200000e+01 : f32
      %139 = vector.broadcast %cst_45 : f32 to vector<16x1xf32>
      %140 = arith.divf %138, %139 : vector<16x1xf32>
      %141 = vector.broadcast %131 : vector<16x1xf32> to vector<16x32xf32>
      %142 = arith.subf %127, %141 : vector<16x32xf32>
      %cst_46 = arith.constant 9.99999974E-6 : f32
      %143 = vector.broadcast %cst_46 : f32 to vector<16x1xf32>
      %144 = arith.addf %140, %143 : vector<16x1xf32>
      %145 = math.rsqrt %144 : vector<16x1xf32>
      %146 = vector.broadcast %145 : vector<16x1xf32> to vector<16x32xf32>
      %147 = arith.mulf %142, %146 : vector<16x32xf32>
      %148 = vector.broadcast %11 : vector<1x32xf32> to vector<16x32xf32>
      %149 = arith.mulf %147, %148 : vector<16x32xf32>
      %150 = vector.broadcast %12 : vector<1x32xf32> to vector<16x32xf32>
      %151 = arith.addf %149, %150 : vector<16x32xf32>
      scf.yield %151 : vector<16x32xf32>
    }
    %c0_15 = arith.constant 0 : index
    %c0_16 = arith.constant 0 : index
    %16 = vector.load %arg8[%c0_15, %c0_16] : memref<16x32xf32, #tpu.memory_space<vmem>>, vector<16x32xf32>
    tpu.vector_store %arg8[%c0_15, %c0_16], %15 {strides = array<i32>} : memref<16x32xf32, #tpu.memory_space<vmem>>, vector<16x32xf32>,
    return
  }
}

</mosaic_0001>

<llo_original>
// kernel: transformer_encoder.1
$region0: #{transformer_encoder.1}
  #allocation0 [shape = 'u32[]', space=smem, size = 0x4, offset = 0x4, fixed_abs, tag = 'smem constant byte address 0x4 - core index']
  #allocation1 [shape = 'u32[144,128]{1,0:T(1,128)}', space=vmem, size = 0x12000, scoped, tag = 'internal scratch']
  %s0 = inlined_call_operand.hbm [shape: f32[16,32], index: 0, kind: input, shape index: {}]
  %s1 = inlined_call_operand.vmem [shape: f32[32,96], index: 1, kind: input, shape index: {}]
  %s2 = inlined_call_operand.vmem [shape: f32[1,96], index: 2, kind: input, shape index: {}]
  %s3 = inlined_call_operand.vmem [shape: f32[32,32], index: 3, kind: input, shape index: {}]
  %s4 = inlined_call_operand.vmem [shape: f32[32,64], index: 4, kind: input, shape index: {}]
  %s5 = inlined_call_operand.vmem [shape: f32[1,64], index: 5, kind: input, shape index: {}]
  %s6 = inlined_call_operand.vmem [shape: f32[64,32], index: 6, kind: input, shape index: {}]
  %s7 = inlined_call_operand.vmem [shape: f32[6,32], index: 7, kind: input, shape index: {}]
  %s8 = inlined_call_operand.hbm [shape: f32[16,32], index: 8, kind: output, shape index: {}]
  %s9 = sld [smem:[#allocation0]]
  $region53: #{transformer_encoder.1} parent=0
    _
  %s11 = ssub.s32 1, %s9
  %s12 = scalar_select 0, %s11, %s9
  $region1: #{transformer_encoder.1} parent=0
    #allocation2 [shape = 'u8[8192]{0}', space=vmem, size = 0x2000, scoped, tag = 'input window, operand 0, single buffered']
    #allocation3 [shape = 's32[1]{0}', space=sflag, size = 0x4, scoped, tag = 'scoped memory for transformer_encoder.1']
    #allocation4 [shape = 's32[1]{0}', space=sflag, size = 0x4, scoped, tag = 'scoped memory for transformer_encoder.1']
    #allocation5 [shape = 'u8[8192]{0}', space=vmem, size = 0x2000, scoped, tag = 'output window, operand 0, single buffered']
    %13 = vsyncpa [#allocation3], 0
    %14 = vsyncpa [#allocation4], 0
    // Predicated region
    $region2: #{transformer_encoder.1} parent=1 // pred_check
      _
    $region3: #{transformer_encoder.1} parent=1 // pred_check_branch
      %16 = sbr.rel (0) target = $region5
    $region4: #{transformer_encoder.1} parent=1 // pred_region
      %s18 = ssub.s32 256, 256
      %19 = vsyncadd [#allocation3], %s18
      %s20 = sshll.u32 [#allocation2], 4
      %s21 = int_to_ptr.vmem [resolvable:$true] %s20
      %26 = dma.hbm_to_vmem [thread:$0]  %s0, 256, %s21, [#allocation3], 128, 128, 8
    $region5: #{transformer_encoder.1} parent=1 // pred_fallthru
      _
    // Predicated region
    $region6: #{transformer_encoder.1} parent=1 // pred_check
      _
    $region7: #{transformer_encoder.1} parent=1 // pred_check_branch
      %28 = sbr.rel (0) target = $region9
    $region8: #{transformer_encoder.1} parent=1 // pred_region
      _
    $region9: #{transformer_encoder.1} parent=1 // pred_fallthru
      _
    // Predicated region
    $region10: #{transformer_encoder.1} parent=1 // pred_check
      _
    $region11: #{transformer_encoder.1} parent=1 // pred_check_branch
      %30 = sbr.rel (0) target = $region13
    $region12: #{transformer_encoder.1} parent=1 // pred_region
      _
    $region13: #{transformer_encoder.1} parent=1 // pred_fallthru
      _
    // Predicated region
    $region14: #{transformer_encoder.1} parent=1 // pred_check
      _
    $region15: #{transformer_encoder.1} parent=1 // pred_check_branch
      %32 = sbr.rel (0) target = $region17
    $region16: #{transformer_encoder.1} parent=1 // pred_region
      _
    $region17: #{transformer_encoder.1} parent=1 // pred_fallthru
      _
    // Predicated region
    $region18: #{transformer_encoder.1} parent=1 // pred_check
      _
    $region19: #{transformer_encoder.1} parent=1 // pred_check_branch
      %34 = sbr.rel (0) target = $region21
    $region20: #{transformer_encoder.1} parent=1 // pred_region
      _
    $region21: #{transformer_encoder.1} parent=1 // pred_fallthru
      _
    // Predicated region
    $region22: #{transformer_encoder.1} parent=1 // pred_check
      _
    $region23: #{transformer_encoder.1} parent=1 // pred_check_branch
      %36 = sbr.rel (0) target = $region25
    $region24: #{transformer_encoder.1} parent=1 // pred_region
      _
    $region25: #{transformer_encoder.1} parent=1 // pred_fallthru
      _
    // Predicated region
    $region26: #{transformer_encoder.1} parent=1 // pred_check
      _
    $region27: #{transformer_encoder.1} parent=1 // pred_check_branch
      %38 = sbr.rel (0) target = $region29
    $region28: #{transformer_encoder.1} parent=1 // pred_region
      _
    $region29: #{transformer_encoder.1} parent=1 // pred_fallthru
      _
    // Predicated region
    $region30: #{transformer_encoder.1} parent=1 // pred_check
      _
    $region31: #{transformer_encoder.1} parent=1 // pred_check_branch
      %40 = sbr.rel (0) target = $region33
    $region32: #{transformer_encoder.1} parent=1 // pred_region
      _
    $region33: #{transformer_encoder.1} parent=1 // pred_fallthru
      _
    // Predicated region
    $region34: #{transformer_encoder.1} parent=1 // pred_check
      _
    $region35: #{transformer_encoder.1} parent=1 // pred_check_branch
      %42 = sbr.rel (0) target = $region37
    $region36: #{transformer_encoder.1} parent=1 // pred_region
      %43 = dma.done [#allocation3], 256
    $region37: #{transformer_encoder.1} parent=1 // pred_fallthru
      _
    %v44 = vld [vmem:[%s1] sm:$0xff]
    %v45 = vld [vmem:[%s1 + $0x8] sm:$0xff]
    %v46 = vld [vmem:[%s1 + $0x10] sm:$0xff]
    %v47 = vld [vmem:[%s1 + $0x18] sm:$0xff]
    %v48 = vld [vmem:[%s2] sm:$0x1]
    %v49 = vld [vmem:[%s3] sm:$0xff]
    %v50 = vld [vmem:[%s3 + $0x8] sm:$0xff]
    %v51 = vld [vmem:[%s3 + $0x10] sm:$0xff]
    %v52 = vld [vmem:[%s3 + $0x18] sm:$0xff]
    %v53 = vld [vmem:[%s4] sm:$0xff]
    %v54 = vld [vmem:[%s4 + $0x8] sm:$0xff]
    %v55 = vld [vmem:[%s4 + $0x10] sm:$0xff]
    %v56 = vld [vmem:[%s4 + $0x18] sm:$0xff]
    %v57 = vld [vmem:[%s5] sm:$0x1]
    %v58 = vld [vmem:[%s6] sm:$0xff]
    %v59 = vld [vmem:[%s6 + $0x8] sm:$0xff]
    %v60 = vld [vmem:[%s6 + $0x10] sm:$0xff]
    %v61 = vld [vmem:[%s6 + $0x18] sm:$0xff]
    %v62 = vld [vmem:[%s6 + $0x20] sm:$0xff]
    %v63 = vld [vmem:[%s6 + $0x28] sm:$0xff]
    %v64 = vld [vmem:[%s6 + $0x30] sm:$0xff]
    %v65 = vld [vmem:[%s6 + $0x38] sm:$0xff]
    %v66 = vld [vmem:[%s7] sm:$0x3f]
    %v67 = vld [vmem:[#allocation2] sm:$0xff]
    %v68 = vld [vmem:[#allocation2 + $0x8] sm:$0xff]
    loop: start=0, step=1, limit=2
    $region38: #{transformer_encoder.1} parent=1 // loop_pre_header
      _
    $region39: #{transformer_encoder.1} parent=1 // loop_header
      %s70 = sphi 0, %s74
      %p71 = scmp.ge.s32.totalorder %s70, 2
      %v75 = vphi %v67, %v1855
      %v76 = vphi %v68, %v1856
    $region40: #{transformer_encoder.1} parent=1 // loop_header_branch
      %73 = sbr.rel (%p71) target = $region44
    $region41: #{transformer_encoder.1} parent=1 // loop_body
      %v78 = vlaneseq
      %v79 = vshrl.u32 %v78, 7
      %v80 = vsub.s32 0, %v79
      %v81 = vrot.slane %v48, %v80
      %vm83 = vcmask 261120
      %v85 = vsel %vm83, %v75, 0
      %v88 = vsel %vm83, %v76, 0
      %90 = vmatprep.subr.mxu0 0.0
      %91 = vmatpush1.msra.mxu0 %v44
      %92 = vmatprep.subr.mxu0 0.0
      %93 = vmatpush1.msra.mxu0 %v45
      %94 = vmatprep.subr.mxu0 0.0
      %95 = vmatpush1.msra.mxu0 %v46
      %96 = vmatprep.subr.mxu0 0.0
      %97 = vmatpush1.msra.mxu0 %v47
      %98 = vmatprep.subr.mxu0 0.0
      %99 = vmatpush1.msra.mxu0 0.0
      %100 = vmatprep.subr.mxu0 0.0
      %101 = vmatpush1.msra.mxu0 0.0
      %102 = vmatprep.subr.mxu0 0.0
      %103 = vmatpush1.msra.mxu0 0.0
      %104 = vmatprep.subr.mxu0 0.0
      %105 = vmatpush1.msra.mxu0 0.0
      %106 = vmatprep.subr.mxu0 0.0
      %107 = vmatpush1.msra.mxu0 0.0
      %108 = vmatprep.subr.mxu0 0.0
      %109 = vmatpush1.msra.mxu0 0.0
      %110 = vmatprep.subr.mxu0 0.0
      %111 = vmatpush1.msra.mxu0 0.0
      %112 = vmatprep.subr.mxu0 0.0
      %113 = vmatpush1.msra.mxu0 0.0
      %114 = vmatprep.subr.mxu0 0.0
      %115 = vmatpush1.msra.mxu0 0.0
      %116 = vmatprep.subr.mxu0 0.0
      %117 = vmatpush1.msra.mxu0 0.0
      %118 = vmatprep.subr.mxu0 0.0
      %119 = vmatpush1.msra.mxu0 0.0
      %120 = vmatprep.subr.mxu0 0.0
      %121 = vmatpush1.msra.mxu0 0.0
      %122 = vmatprep.subr.mxu0 0.0
      %123 = vmatpush1.msra.mxu0 0.0
      %124 = vmatprep.subr.mxu0 0.0
      %125 = vmatpush1.msra.mxu0 0.0
      %126 = vmatprep.subr.mxu0 0.0
      %127 = vmatpush1.msra.mxu0 0.0
      %128 = vmatprep.subr.mxu0 0.0
      %129 = vmatpush1.msra.mxu0 0.0
      %130 = vmatprep.subr.mxu0 0.0
      %131 = vmatpush1.msra.mxu0 0.0
      %132 = vmatprep.subr.mxu0 0.0
      %133 = vmatpush1.msra.mxu0 0.0
      %134 = vmatprep.subr.mxu0 0.0
      %135 = vmatpush1.msra.mxu0 0.0
      %136 = vmatprep.subr.mxu0 0.0
      %137 = vmatpush1.msra.mxu0 0.0
      %138 = vmatprep.subr.mxu0 0.0
      %139 = vmatpush1.msra.mxu0 0.0
      %140 = vmatprep.subr.mxu0 0.0
      %141 = vmatpush1.msra.mxu0 0.0
      %142 = vmatprep.subr.mxu0 0.0
      %143 = vmatpush1.msra.mxu0 0.0
      %144 = vmatprep.subr.mxu0 0.0
      %145 = vmatpush1.msra.mxu0 0.0
      %146 = vmatprep.subr.mxu0 0.0
      %147 = vmatpush1.msra.mxu0 0.0
      %148 = vmatprep.subr.mxu0 0.0
      %149 = vmatpush1.msra.mxu0 0.0
      %150 = vmatprep.subr.mxu0 0.0
      %151 = vmatpush1.msra.mxu0 0.0
      %152 = vmatprep.subr.mxu0 0.0
      %153 = vmatpush1.msra.mxu0 0.0
      %154 = vmatprep.mubr.f32.mxu0 0.0
      %155 = vmatmul.mubr.f32.gmra.mrb[0].mxu0 %v85
      %v156 = vpop.f32.mrb[0].mxu0
      %v157 = vadd.f32 %v81, %v156
      %v158 = vpop.f32.mrb[0].mxu0
      %159 = vmatprep.mubr.f32.mxu0 0.0
      %160 = vmatmul.mubr.f32.gmra.mrb[0].mxu0 %v88
      %v161 = vpop.f32.mrb[0].mxu0
      %v162 = vadd.f32 %v81, %v161
      %v163 = vpop.f32.mrb[0].mxu0
      %164 = vdwg.mxu0
      %166 = vrot.lane.b32.xlu0 %v157, 96
      %v167 = vpop.permute.xlu0 %166
      %vm168 = vcmask 64512
      %v169 = vsel %vm168, %v157, 0
      %v171 = vsel %vm168, %v167, 0
      %173 = vmatprep.subr.mxu0 0.0
      %174 = vmatpush1.xpose.msra.mxu0 %v171
      %175 = vmatprep.subr.mxu0 0.0
      %176 = vmatpush1.xpose.msra.mxu0 0.0
      %177 = vmatprep.subr.mxu0 0.0
      %178 = vmatpush1.xpose.msra.mxu0 0.0
      %179 = vmatprep.subr.mxu0 0.0
      %180 = vmatpush1.xpose.msra.mxu0 0.0
      %181 = vmatprep.subr.mxu0 0.0
      %182 = vmatpush1.xpose.msra.mxu0 0.0
      %183 = vmatprep.subr.mxu0 0.0
      %184 = vmatpush1.xpose.msra.mxu0 0.0
      %185 = vmatprep.subr.mxu0 0.0
      %186 = vmatpush1.xpose.msra.mxu0 0.0
      %187 = vmatprep.subr.mxu0 0.0
      %188 = vmatpush1.xpose.msra.mxu0 0.0
      %189 = vmatprep.subr.mxu0 0.0
      %190 = vmatpush1.xpose.msra.mxu0 0.0
      %191 = vmatprep.subr.mxu0 0.0
      %192 = vmatpush1.xpose.msra.mxu0 0.0
      %193 = vmatprep.subr.mxu0 0.0
      %194 = vmatpush1.xpose.msra.mxu0 0.0
      %195 = vmatprep.subr.mxu0 0.0
      %196 = vmatpush1.xpose.msra.mxu0 0.0
      %197 = vmatprep.subr.mxu0 0.0
      %198 = vmatpush1.xpose.msra.mxu0 0.0
      %199 = vmatprep.subr.mxu0 0.0
      %200 = vmatpush1.xpose.msra.mxu0 0.0
      %201 = vmatprep.subr.mxu0 0.0
      %202 = vmatpush1.xpose.msra.mxu0 0.0
      %203 = vmatprep.subr.mxu0 0.0
      %204 = vmatpush1.xpose.msra.mxu0 0.0
      %205 = vmatprep.subr.mxu0 0.0
      %206 = vmatpush1.xpose.msra.mxu0 0.0
      %207 = vmatprep.subr.mxu0 0.0
      %208 = vmatpush1.xpose.msra.mxu0 0.0
      %209 = vmatprep.subr.mxu0 0.0
      %210 = vmatpush1.xpose.msra.mxu0 0.0
      %211 = vmatprep.subr.mxu0 0.0
      %212 = vmatpush1.xpose.msra.mxu0 0.0
      %213 = vmatprep.subr.mxu0 0.0
      %214 = vmatpush1.xpose.msra.mxu0 0.0
      %215 = vmatprep.subr.mxu0 0.0
      %216 = vmatpush1.xpose.msra.mxu0 0.0
      %217 = vmatprep.subr.mxu0 0.0
      %218 = vmatpush1.xpose.msra.mxu0 0.0
      %219 = vmatprep.subr.mxu0 0.0
      %220 = vmatpush1.xpose.msra.mxu0 0.0
      %221 = vmatprep.subr.mxu0 0.0
      %222 = vmatpush1.xpose.msra.mxu0 0.0
      %223 = vmatprep.subr.mxu0 0.0
      %224 = vmatpush1.xpose.msra.mxu0 0.0
      %225 = vmatprep.subr.mxu0 0.0
      %226 = vmatpush1.xpose.msra.mxu0 0.0
      %227 = vmatprep.subr.mxu0 0.0
      %228 = vmatpush1.xpose.msra.mxu0 0.0
      %229 = vmatprep.subr.mxu0 0.0
      %230 = vmatpush1.xpose.msra.mxu0 0.0
      %231 = vmatprep.subr.mxu0 0.0
      %232 = vmatpush1.xpose.msra.mxu0 0.0
      %233 = vmatprep.subr.mxu0 0.0
      %234 = vmatpush1.xpose.msra.mxu0 0.0
      %235 = vmatprep.subr.mxu0 0.0
      %236 = vmatpush1.xpose.msra.mxu0 0.0
      %237 = vmatprep.mubr.f32.mxu0 0.0
      %238 = vmatmul.mubr.f32.gmra.mrb[0].mxu0 %v169
      %v239 = vpop.f32.mrb[0].mxu0
      %v240 = vadd.f32 0.0, %v239
      %v241 = vpop.f32.mrb[0].mxu0
      %242 = vdwg.mxu0
      %244 = vrot.lane.b32.xlu0 %v162, 96
      %v245 = vpop.permute.xlu0 %244
      %v246 = vsel %vm168, %v162, 0
      %v248 = vsel %vm168, %v245, 0
      %250 = vmatprep.subr.mxu0 0.0
      %251 = vmatpush1.xpose.msra.mxu0 %v248
      %252 = vmatprep.subr.mxu0 0.0
      %253 = vmatpush1.xpose.msra.mxu0 0.0
      %254 = vmatprep.subr.mxu0 0.0
      %255 = vmatpush1.xpose.msra.mxu0 0.0
      %256 = vmatprep.subr.mxu0 0.0
      %257 = vmatpush1.xpose.msra.mxu0 0.0
      %258 = vmatprep.subr.mxu0 0.0
      %259 = vmatpush1.xpose.msra.mxu0 0.0
      %260 = vmatprep.subr.mxu0 0.0
      %261 = vmatpush1.xpose.msra.mxu0 0.0
      %262 = vmatprep.subr.mxu0 0.0
      %263 = vmatpush1.xpose.msra.mxu0 0.0
      %264 = vmatprep.subr.mxu0 0.0
      %265 = vmatpush1.xpose.msra.mxu0 0.0
      %266 = vmatprep.subr.mxu0 0.0
      %267 = vmatpush1.xpose.msra.mxu0 0.0
      %268 = vmatprep.subr.mxu0 0.0
      %269 = vmatpush1.xpose.msra.mxu0 0.0
      %270 = vmatprep.subr.mxu0 0.0
      %271 = vmatpush1.xpose.msra.mxu0 0.0
      %272 = vmatprep.subr.mxu0 0.0
      %273 = vmatpush1.xpose.msra.mxu0 0.0
      %274 = vmatprep.subr.mxu0 0.0
      %275 = vmatpush1.xpose.msra.mxu0 0.0
      %276 = vmatprep.subr.mxu0 0.0
      %277 = vmatpush1.xpose.msra.mxu0 0.0
      %278 = vmatprep.subr.mxu0 0.0
      %279 = vmatpush1.xpose.msra.mxu0 0.0
      %280 = vmatprep.subr.mxu0 0.0
      %281 = vmatpush1.xpose.msra.mxu0 0.0
      %282 = vmatprep.subr.mxu0 0.0
      %283 = vmatpush1.xpose.msra.mxu0 0.0
      %284 = vmatprep.subr.mxu0 0.0
      %285 = vmatpush1.xpose.msra.mxu0 0.0
      %286 = vmatprep.subr.mxu0 0.0
      %287 = vmatpush1.xpose.msra.mxu0 0.0
      %288 = vmatprep.subr.mxu0 0.0
      %289 = vmatpush1.xpose.msra.mxu0 0.0
      %290 = vmatprep.subr.mxu0 0.0
      %291 = vmatpush1.xpose.msra.mxu0 0.0
      %292 = vmatprep.subr.mxu0 0.0
      %293 = vmatpush1.xpose.msra.mxu0 0.0
      %294 = vmatprep.subr.mxu0 0.0
      %295 = vmatpush1.xpose.msra.mxu0 0.0
      %296 = vmatprep.subr.mxu0 0.0
      %297 = vmatpush1.xpose.msra.mxu0 0.0
      %298 = vmatprep.subr.mxu0 0.0
      %299 = vmatpush1.xpose.msra.mxu0 0.0
      %300 = vmatprep.subr.mxu0 0.0
      %301 = vmatpush1.xpose.msra.mxu0 0.0
      %302 = vmatprep.subr.mxu0 0.0
      %303 = vmatpush1.xpose.msra.mxu0 0.0
      %304 = vmatprep.subr.mxu0 0.0
      %305 = vmatpush1.xpose.msra.mxu0 0.0
      %306 = vmatprep.subr.mxu0 0.0
      %307 = vmatpush1.xpose.msra.mxu0 0.0
      %308 = vmatprep.subr.mxu0 0.0
      %309 = vmatpush1.xpose.msra.mxu0 0.0
      %310 = vmatprep.subr.mxu0 0.0
      %311 = vmatpush1.xpose.msra.mxu0 0.0
      %312 = vmatprep.subr.mxu0 0.0
      %313 = vmatpush1.xpose.msra.mxu0 0.0
      %314 = vmatprep.mubr.f32.mxu0 0.0
      %315 = vmatmul.mubr.f32.gmra.mrb[0].mxu0 %v246
      %v316 = vpop.f32.mrb[0].mxu0
      %v317 = vadd.f32 0.0, %v316
      %v318 = vpop.f32.mrb[0].mxu0
      %319 = vdwg.mxu0
      %v320 = vsel %vm168, %v240, -inf
      %321 = vmax.xlane.f32.xlu0 %v320
      %v322 = vpop.xlane.xlu0 %321
      %v323 = vsel %vm168, %v317, -inf
      %324 = vmax.xlane.f32.xlu0 %v323
      %v325 = vpop.xlane.xlu0 %324
      %v326 = vsub.f32 %v240, %v322
      %v327 = vsub.f32 %v317, %v325
      %v328 = vmul.f32 %v326, 1.442695
      %v329 = vpow.pop %v328
      %v330 = vmul.f32 %v327, 1.442695
      %v331 = vpow.pop %v330
      %v332 = vsel %vm168, %v329, 0.0
      %333 = vadd.xlane.f32.xlu0 %v332
      %v334 = vpop.xlane.xlu0 %333
      %v335 = vsel %vm168, %v331, 0.0
      %336 = vadd.xlane.f32.xlu0 %v335
      %v337 = vpop.xlane.xlu0 %336
      %v338 = vrcp.pop %v334
      %v339 = vrcp.pop %v337
      %v340 = vmul.f32 %v329, %v338
      %v341 = vmul.f32 %v331, %v339
      %342 = vrot.lane.b32.xlu0 %v157, 64
      %v343 = vpop.permute.xlu0 %342
      %v346 = vsel %vm168, %v340, 0
      %348 = vmatprep.subr.mxu0 0.0
      %349 = vmatpush1.msra.mxu0 %v343
      %350 = vmatprep.subr.mxu0 0.0
      %351 = vmatpush1.msra.mxu0 0.0
      %352 = vmatprep.subr.mxu0 0.0
      %353 = vmatpush1.msra.mxu0 0.0
      %354 = vmatprep.subr.mxu0 0.0
      %355 = vmatpush1.msra.mxu0 0.0
      %356 = vmatprep.subr.mxu0 0.0
      %357 = vmatpush1.msra.mxu0 0.0
      %358 = vmatprep.subr.mxu0 0.0
      %359 = vmatpush1.msra.mxu0 0.0
      %360 = vmatprep.subr.mxu0 0.0
      %361 = vmatpush1.msra.mxu0 0.0
      %362 = vmatprep.subr.mxu0 0.0
      %363 = vmatpush1.msra.mxu0 0.0
      %364 = vmatprep.subr.mxu0 0.0
      %365 = vmatpush1.msra.mxu0 0.0
      %366 = vmatprep.subr.mxu0 0.0
      %367 = vmatpush1.msra.mxu0 0.0
      %368 = vmatprep.subr.mxu0 0.0
      %369 = vmatpush1.msra.mxu0 0.0
      %370 = vmatprep.subr.mxu0 0.0
      %371 = vmatpush1.msra.mxu0 0.0
      %372 = vmatprep.subr.mxu0 0.0
      %373 = vmatpush1.msra.mxu0 0.0
      %374 = vmatprep.subr.mxu0 0.0
      %375 = vmatpush1.msra.mxu0 0.0
      %376 = vmatprep.subr.mxu0 0.0
      %377 = vmatpush1.msra.mxu0 0.0
      %378 = vmatprep.subr.mxu0 0.0
      %379 = vmatpush1.msra.mxu0 0.0
      %380 = vmatprep.subr.mxu0 0.0
      %381 = vmatpush1.msra.mxu0 0.0
      %382 = vmatprep.subr.mxu0 0.0
      %383 = vmatpush1.msra.mxu0 0.0
      %384 = vmatprep.subr.mxu0 0.0
      %385 = vmatpush1.msra.mxu0 0.0
      %386 = vmatprep.subr.mxu0 0.0
      %387 = vmatpush1.msra.mxu0 0.0
      %388 = vmatprep.subr.mxu0 0.0
      %389 = vmatpush1.msra.mxu0 0.0
      %390 = vmatprep.subr.mxu0 0.0
      %391 = vmatpush1.msra.mxu0 0.0
      %392 = vmatprep.subr.mxu0 0.0
      %393 = vmatpush1.msra.mxu0 0.0
      %394 = vmatprep.subr.mxu0 0.0
      %395 = vmatpush1.msra.mxu0 0.0
      %396 = vmatprep.subr.mxu0 0.0
      %397 = vmatpush1.msra.mxu0 0.0
      %398 = vmatprep.subr.mxu0 0.0
      %399 = vmatpush1.msra.mxu0 0.0
      %400 = vmatprep.subr.mxu0 0.0
      %401 = vmatpush1.msra.mxu0 0.0
      %402 = vmatprep.subr.mxu0 0.0
      %403 = vmatpush1.msra.mxu0 0.0
      %404 = vmatprep.subr.mxu0 0.0
      %405 = vmatpush1.msra.mxu0 0.0
      %406 = vmatprep.subr.mxu0 0.0
      %407 = vmatpush1.msra.mxu0 0.0
      %408 = vmatprep.subr.mxu0 0.0
      %409 = vmatpush1.msra.mxu0 0.0
      %410 = vmatprep.subr.mxu0 0.0
      %411 = vmatpush1.msra.mxu0 0.0
      %412 = vmatprep.mubr.f32.mxu0 0.0
      %413 = vmatmul.mubr.f32.gmra.mrb[0].mxu0 %v346
      %v414 = vpop.f32.mrb[0].mxu0
      %v415 = vadd.f32 0.0, %v414
      %v416 = vpop.f32.mrb[0].mxu0
      %417 = vdwg.mxu0
      %418 = vrot.lane.b32.xlu0 %v162, 64
      %v419 = vpop.permute.xlu0 %418
      %v422 = vsel %vm168, %v341, 0
      %424 = vmatprep.subr.mxu0 0.0
      %425 = vmatpush1.msra.mxu0 %v419
      %426 = vmatprep.subr.mxu0 0.0
      %427 = vmatpush1.msra.mxu0 0.0
      %428 = vmatprep.subr.mxu0 0.0
      %429 = vmatpush1.msra.mxu0 0.0
      %430 = vmatprep.subr.mxu0 0.0
      %431 = vmatpush1.msra.mxu0 0.0
      %432 = vmatprep.subr.mxu0 0.0
      %433 = vmatpush1.msra.mxu0 0.0
      %434 = vmatprep.subr.mxu0 0.0
      %435 = vmatpush1.msra.mxu0 0.0
      %436 = vmatprep.subr.mxu0 0.0
      %437 = vmatpush1.msra.mxu0 0.0
      %438 = vmatprep.subr.mxu0 0.0
      %439 = vmatpush1.msra.mxu0 0.0
      %440 = vmatprep.subr.mxu0 0.0
      %441 = vmatpush1.msra.mxu0 0.0
      %442 = vmatprep.subr.mxu0 0.0
      %443 = vmatpush1.msra.mxu0 0.0
      %444 = vmatprep.subr.mxu0 0.0
      %445 = vmatpush1.msra.mxu0 0.0
      %446 = vmatprep.subr.mxu0 0.0
      %447 = vmatpush1.msra.mxu0 0.0
      %448 = vmatprep.subr.mxu0 0.0
      %449 = vmatpush1.msra.mxu0 0.0
      %450 = vmatprep.subr.mxu0 0.0
      %451 = vmatpush1.msra.mxu0 0.0
      %452 = vmatprep.subr.mxu0 0.0
      %453 = vmatpush1.msra.mxu0 0.0
      %454 = vmatprep.subr.mxu0 0.0
      %455 = vmatpush1.msra.mxu0 0.0
      %456 = vmatprep.subr.mxu0 0.0
      %457 = vmatpush1.msra.mxu0 0.0
      %458 = vmatprep.subr.mxu0 0.0
      %459 = vmatpush1.msra.mxu0 0.0
      %460 = vmatprep.subr.mxu0 0.0
      %461 = vmatpush1.msra.mxu0 0.0
      %462 = vmatprep.subr.mxu0 0.0
      %463 = vmatpush1.msra.mxu0 0.0
      %464 = vmatprep.subr.mxu0 0.0
      %465 = vmatpush1.msra.mxu0 0.0
      %466 = vmatprep.subr.mxu0 0.0
      %467 = vmatpush1.msra.mxu0 0.0
      %468 = vmatprep.subr.mxu0 0.0
      %469 = vmatpush1.msra.mxu0 0.0
      %470 = vmatprep.subr.mxu0 0.0
      %471 = vmatpush1.msra.mxu0 0.0
      %472 = vmatprep.subr.mxu0 0.0
      %473 = vmatpush1.msra.mxu0 0.0
      %474 = vmatprep.subr.mxu0 0.0
      %475 = vmatpush1.msra.mxu0 0.0
      %476 = vmatprep.subr.mxu0 0.0
      %477 = vmatpush1.msra.mxu0 0.0
      %478 = vmatprep.subr.mxu0 0.0
      %479 = vmatpush1.msra.mxu0 0.0
      %480 = vmatprep.subr.mxu0 0.0
      %481 = vmatpush1.msra.mxu0 0.0
      %482 = vmatprep.subr.mxu0 0.0
      %483 = vmatpush1.msra.mxu0 0.0
      %484 = vmatprep.subr.mxu0 0.0
      %485 = vmatpush1.msra.mxu0 0.0
      %486 = vmatprep.subr.mxu0 0.0
      %487 = vmatpush1.msra.mxu0 0.0
      %488 = vmatprep.mubr.f32.mxu0 0.0
      %489 = vmatmul.mubr.f32.gmra.mrb[0].mxu0 %v422
      %v490 = vpop.f32.mrb[0].mxu0
      %v491 = vadd.f32 0.0, %v490
      %v492 = vpop.f32.mrb[0].mxu0
      %493 = vdwg.mxu0
      %494 = vrot.lane.b32.xlu0 %v157, 120
      %v495 = vpop.permute.xlu0 %494
      %496 = vrot.lane.b32.xlu0 %v157, 88
      %v497 = vpop.permute.xlu0 %496
      %v498 = vsel %vm168, %v495, 0
      %v500 = vsel %vm168, %v497, 0
      %502 = vmatprep.subr.mxu0 0.0
      %503 = vmatpush1.xpose.msra.mxu0 %v500
      %504 = vmatprep.subr.mxu0 0.0
      %505 = vmatpush1.xpose.msra.mxu0 0.0
      %506 = vmatprep.subr.mxu0 0.0
      %507 = vmatpush1.xpose.msra.mxu0 0.0
      %508 = vmatprep.subr.mxu0 0.0
      %509 = vmatpush1.xpose.msra.mxu0 0.0
      %510 = vmatprep.subr.mxu0 0.0
      %511 = vmatpush1.xpose.msra.mxu0 0.0
      %512 = vmatprep.subr.mxu0 0.0
      %513 = vmatpush1.xpose.msra.mxu0 0.0
      %514 = vmatprep.subr.mxu0 0.0
      %515 = vmatpush1.xpose.msra.mxu0 0.0
      %516 = vmatprep.subr.mxu0 0.0
      %517 = vmatpush1.xpose.msra.mxu0 0.0
      %518 = vmatprep.subr.mxu0 0.0
      %519 = vmatpush1.xpose.msra.mxu0 0.0
      %520 = vmatprep.subr.mxu0 0.0
      %521 = vmatpush1.xpose.msra.mxu0 0.0
      %522 = vmatprep.subr.mxu0 0.0
      %523 = vmatpush1.xpose.msra.mxu0 0.0
      %524 = vmatprep.subr.mxu0 0.0
      %525 = vmatpush1.xpose.msra.mxu0 0.0
      %526 = vmatprep.subr.mxu0 0.0
      %527 = vmatpush1.xpose.msra.mxu0 0.0
      %528 = vmatprep.subr.mxu0 0.0
      %529 = vmatpush1.xpose.msra.mxu0 0.0
      %530 = vmatprep.subr.mxu0 0.0
      %531 = vmatpush1.xpose.msra.mxu0 0.0
      %532 = vmatprep.subr.mxu0 0.0
      %533 = vmatpush1.xpose.msra.mxu0 0.0
      %534 = vmatprep.subr.mxu0 0.0
      %535 = vmatpush1.xpose.msra.mxu0 0.0
      %536 = vmatprep.subr.mxu0 0.0
      %537 = vmatpush1.xpose.msra.mxu0 0.0
      %538 = vmatprep.subr.mxu0 0.0
      %539 = vmatpush1.xpose.msra.mxu0 0.0
      %540 = vmatprep.subr.mxu0 0.0
      %541 = vmatpush1.xpose.msra.mxu0 0.0
      %542 = vmatprep.subr.mxu0 0.0
      %543 = vmatpush1.xpose.msra.mxu0 0.0
      %544 = vmatprep.subr.mxu0 0.0
      %545 = vmatpush1.xpose.msra.mxu0 0.0
      %546 = vmatprep.subr.mxu0 0.0
      %547 = vmatpush1.xpose.msra.mxu0 0.0
      %548 = vmatprep.subr.mxu0 0.0
      %549 = vmatpush1.xpose.msra.mxu0 0.0
      %550 = vmatprep.subr.mxu0 0.0
      %551 = vmatpush1.xpose.msra.mxu0 0.0
      %552 = vmatprep.subr.mxu0 0.0
      %553 = vmatpush1.xpose.msra.mxu0 0.0
      %554 = vmatprep.subr.mxu0 0.0
      %555 = vmatpush1.xpose.msra.mxu0 0.0
      %556 = vmatprep.subr.mxu0 0.0
      %557 = vmatpush1.xpose.msra.mxu0 0.0
      %558 = vmatprep.subr.mxu0 0.0
      %559 = vmatpush1.xpose.msra.mxu0 0.0
      %560 = vmatprep.subr.mxu0 0.0
      %561 = vmatpush1.xpose.msra.mxu0 0.0
      %562 = vmatprep.subr.mxu0 0.0
      %563 = vmatpush1.xpose.msra.mxu0 0.0
      %564 = vmatprep.subr.mxu0 0.0
      %565 = vmatpush1.xpose.msra.mxu0 0.0
      %566 = vmatprep.mubr.f32.mxu0 0.0
      %567 = vmatmul.mubr.f32.gmra.mrb[0].mxu0 %v498
      %v568 = vpop.f32.mrb[0].mxu0
      %v569 = vadd.f32 0.0, %v568
      %v570 = vpop.f32.mrb[0].mxu0
      %571 = vdwg.mxu0
      %572 = vrot.lane.b32.xlu0 %v162, 120
      %v573 = vpop.permute.xlu0 %572
      %574 = vrot.lane.b32.xlu0 %v162, 88
      %v575 = vpop.permute.xlu0 %574
      %v576 = vsel %vm168, %v573, 0
      %v578 = vsel %vm168, %v575, 0
      %580 = vmatprep.subr.mxu0 0.0
      %581 = vmatpush1.xpose.msra.mxu0 %v578
      %582 = vmatprep.subr.mxu0 0.0
      %583 = vmatpush1.xpose.msra.mxu0 0.0
      %584 = vmatprep.subr.mxu0 0.0
      %585 = vmatpush1.xpose.msra.mxu0 0.0
      %586 = vmatprep.subr.mxu0 0.0
      %587 = vmatpush1.xpose.msra.mxu0 0.0
      %588 = vmatprep.subr.mxu0 0.0
      %589 = vmatpush1.xpose.msra.mxu0 0.0
      %590 = vmatprep.subr.mxu0 0.0
      %591 = vmatpush1.xpose.msra.mxu0 0.0
      %592 = vmatprep.subr.mxu0 0.0
      %593 = vmatpush1.xpose.msra.mxu0 0.0
      %594 = vmatprep.subr.mxu0 0.0
      %595 = vmatpush1.xpose.msra.mxu0 0.0
      %596 = vmatprep.subr.mxu0 0.0
      %597 = vmatpush1.xpose.msra.mxu0 0.0
      %598 = vmatprep.subr.mxu0 0.0
      %599 = vmatpush1.xpose.msra.mxu0 0.0
      %600 = vmatprep.subr.mxu0 0.0
      %601 = vmatpush1.xpose.msra.mxu0 0.0
      %602 = vmatprep.subr.mxu0 0.0
      %603 = vmatpush1.xpose.msra.mxu0 0.0
      %604 = vmatprep.subr.mxu0 0.0
      %605 = vmatpush1.xpose.msra.mxu0 0.0
      %606 = vmatprep.subr.mxu0 0.0
      %607 = vmatpush1.xpose.msra.mxu0 0.0
      %608 = vmatprep.subr.mxu0 0.0
      %609 = vmatpush1.xpose.msra.mxu0 0.0
      %610 = vmatprep.subr.mxu0 0.0
      %611 = vmatpush1.xpose.msra.mxu0 0.0
      %612 = vmatprep.subr.mxu0 0.0
      %613 = vmatpush1.xpose.msra.mxu0 0.0
      %614 = vmatprep.subr.mxu0 0.0
      %615 = vmatpush1.xpose.msra.mxu0 0.0
      %616 = vmatprep.subr.mxu0 0.0
      %617 = vmatpush1.xpose.msra.mxu0 0.0
      %618 = vmatprep.subr.mxu0 0.0
      %619 = vmatpush1.xpose.msra.mxu0 0.0
      %620 = vmatprep.subr.mxu0 0.0
      %621 = vmatpush1.xpose.msra.mxu0 0.0
      %622 = vmatprep.subr.mxu0 0.0
      %623 = vmatpush1.xpose.msra.mxu0 0.0
      %624 = vmatprep.subr.mxu0 0.0
      %625 = vmatpush1.xpose.msra.mxu0 0.0
      %626 = vmatprep.subr.mxu0 0.0
      %627 = vmatpush1.xpose.msra.mxu0 0.0
      %628 = vmatprep.subr.mxu0 0.0
      %629 = vmatpush1.xpose.msra.mxu0 0.0
      %630 = vmatprep.subr.mxu0 0.0
      %631 = vmatpush1.xpose.msra.mxu0 0.0
      %632 = vmatprep.subr.mxu0 0.0
      %633 = vmatpush1.xpose.msra.mxu0 0.0
      %634 = vmatprep.subr.mxu0 0.0
      %635 = vmatpush1.xpose.msra.mxu0 0.0
      %636 = vmatprep.subr.mxu0 0.0
      %637 = vmatpush1.xpose.msra.mxu0 0.0
      %638 = vmatprep.subr.mxu0 0.0
      %639 = vmatpush1.xpose.msra.mxu0 0.0
      %640 = vmatprep.subr.mxu0 0.0
      %641 = vmatpush1.xpose.msra.mxu0 0.0
      %642 = vmatprep.subr.mxu0 0.0
      %643 = vmatpush1.xpose.msra.mxu0 0.0
      %644 = vmatprep.mubr.f32.mxu0 0.0
      %645 = vmatmul.mubr.f32.gmra.mrb[0].mxu0 %v576
      %v646 = vpop.f32.mrb[0].mxu0
      %v647 = vadd.f32 0.0, %v646
      %v648 = vpop.f32.mrb[0].mxu0
      %649 = vdwg.mxu0
      %v650 = vsel %vm168, %v569, -inf
      %651 = vmax.xlane.f32.xlu0 %v650
      %v652 = vpop.xlane.xlu0 %651
      %v653 = vsel %vm168, %v647, -inf
      %654 = vmax.xlane.f32.xlu0 %v653
      %v655 = vpop.xlane.xlu0 %654
      %v656 = vsub.f32 %v569, %v652
      %v657 = vsub.f32 %v647, %v655
      %v658 = vmul.f32 %v656, 1.442695
      %v659 = vpow.pop %v658
      %v660 = vmul.f32 %v657, 1.442695
      %v661 = vpow.pop %v660
      %v662 = vsel %vm168, %v659, 0.0
      %663 = vadd.xlane.f32.xlu0 %v662
      %v664 = vpop.xlane.xlu0 %663
      %v665 = vsel %vm168, %v661, 0.0
      %666 = vadd.xlane.f32.xlu0 %v665
      %v667 = vpop.xlane.xlu0 %666
      %v668 = vrcp.pop %v664
      %v669 = vrcp.pop %v667
      %v670 = vmul.f32 %v659, %v668
      %v671 = vmul.f32 %v661, %v669
      %672 = vrot.lane.b32.xlu0 %v157, 56
      %v673 = vpop.permute.xlu0 %672
      %v676 = vsel %vm168, %v670, 0
      %678 = vmatprep.subr.mxu0 0.0
      %679 = vmatpush1.msra.mxu0 %v673
      %680 = vmatprep.subr.mxu0 0.0
      %681 = vmatpush1.msra.mxu0 0.0
      %682 = vmatprep.subr.mxu0 0.0
      %683 = vmatpush1.msra.mxu0 0.0
      %684 = vmatprep.subr.mxu0 0.0
      %685 = vmatpush1.msra.mxu0 0.0
      %686 = vmatprep.subr.mxu0 0.0
      %687 = vmatpush1.msra.mxu0 0.0
      %688 = vmatprep.subr.mxu0 0.0
      %689 = vmatpush1.msra.mxu0 0.0
      %690 = vmatprep.subr.mxu0 0.0
      %691 = vmatpush1.msra.mxu0 0.0
      %692 = vmatprep.subr.mxu0 0.0
      %693 = vmatpush1.msra.mxu0 0.0
      %694 = vmatprep.subr.mxu0 0.0
      %695 = vmatpush1.msra.mxu0 0.0
      %696 = vmatprep.subr.mxu0 0.0
      %697 = vmatpush1.msra.mxu0 0.0
      %698 = vmatprep.subr.mxu0 0.0
      %699 = vmatpush1.msra.mxu0 0.0
      %700 = vmatprep.subr.mxu0 0.0
      %701 = vmatpush1.msra.mxu0 0.0
      %702 = vmatprep.subr.mxu0 0.0
      %703 = vmatpush1.msra.mxu0 0.0
      %704 = vmatprep.subr.mxu0 0.0
      %705 = vmatpush1.msra.mxu0 0.0
      %706 = vmatprep.subr.mxu0 0.0
      %707 = vmatpush1.msra.mxu0 0.0
      %708 = vmatprep.subr.mxu0 0.0
      %709 = vmatpush1.msra.mxu0 0.0
      %710 = vmatprep.subr.mxu0 0.0
      %711 = vmatpush1.msra.mxu0 0.0
      %712 = vmatprep.subr.mxu0 0.0
      %713 = vmatpush1.msra.mxu0 0.0
      %714 = vmatprep.subr.mxu0 0.0
      %715 = vmatpush1.msra.mxu0 0.0
      %716 = vmatprep.subr.mxu0 0.0
      %717 = vmatpush1.msra.mxu0 0.0
      %718 = vmatprep.subr.mxu0 0.0
      %719 = vmatpush1.msra.mxu0 0.0
      %720 = vmatprep.subr.mxu0 0.0
      %721 = vmatpush1.msra.mxu0 0.0
      %722 = vmatprep.subr.mxu0 0.0
      %723 = vmatpush1.msra.mxu0 0.0
      %724 = vmatprep.subr.mxu0 0.0
      %725 = vmatpush1.msra.mxu0 0.0
      %726 = vmatprep.subr.mxu0 0.0
      %727 = vmatpush1.msra.mxu0 0.0
      %728 = vmatprep.subr.mxu0 0.0
      %729 = vmatpush1.msra.mxu0 0.0
      %730 = vmatprep.subr.mxu0 0.0
      %731 = vmatpush1.msra.mxu0 0.0
      %732 = vmatprep.subr.mxu0 0.0
      %733 = vmatpush1.msra.mxu0 0.0
      %734 = vmatprep.subr.mxu0 0.0
      %735 = vmatpush1.msra.mxu0 0.0
      %736 = vmatprep.subr.mxu0 0.0
      %737 = vmatpush1.msra.mxu0 0.0
      %738 = vmatprep.subr.mxu0 0.0
      %739 = vmatpush1.msra.mxu0 0.0
      %740 = vmatprep.subr.mxu0 0.0
      %741 = vmatpush1.msra.mxu0 0.0
      %742 = vmatprep.mubr.f32.mxu0 0.0
      %743 = vmatmul.mubr.f32.gmra.mrb[0].mxu0 %v676
      %v744 = vpop.f32.mrb[0].mxu0
      %v745 = vadd.f32 0.0, %v744
      %v746 = vpop.f32.mrb[0].mxu0
      %747 = vdwg.mxu0
      %748 = vrot.lane.b32.xlu0 %v162, 56
      %v749 = vpop.permute.xlu0 %748
      %v752 = vsel %vm168, %v671, 0
      %754 = vmatprep.subr.mxu0 0.0
      %755 = vmatpush1.msra.mxu0 %v749
      %756 = vmatprep.subr.mxu0 0.0
      %757 = vmatpush1.msra.mxu0 0.0
      %758 = vmatprep.subr.mxu0 0.0
      %759 = vmatpush1.msra.mxu0 0.0
      %760 = vmatprep.subr.mxu0 0.0
      %761 = vmatpush1.msra.mxu0 0.0
      %762 = vmatprep.subr.mxu0 0.0
      %763 = vmatpush1.msra.mxu0 0.0
      %764 = vmatprep.subr.mxu0 0.0
      %765 = vmatpush1.msra.mxu0 0.0
      %766 = vmatprep.subr.mxu0 0.0
      %767 = vmatpush1.msra.mxu0 0.0
      %768 = vmatprep.subr.mxu0 0.0
      %769 = vmatpush1.msra.mxu0 0.0
      %770 = vmatprep.subr.mxu0 0.0
      %771 = vmatpush1.msra.mxu0 0.0
      %772 = vmatprep.subr.mxu0 0.0
      %773 = vmatpush1.msra.mxu0 0.0
      %774 = vmatprep.subr.mxu0 0.0
      %775 = vmatpush1.msra.mxu0 0.0
      %776 = vmatprep.subr.mxu0 0.0
      %777 = vmatpush1.msra.mxu0 0.0
      %778 = vmatprep.subr.mxu0 0.0
      %779 = vmatpush1.msra.mxu0 0.0
      %780 = vmatprep.subr.mxu0 0.0
      %781 = vmatpush1.msra.mxu0 0.0
      %782 = vmatprep.subr.mxu0 0.0
      %783 = vmatpush1.msra.mxu0 0.0
      %784 = vmatprep.subr.mxu0 0.0
      %785 = vmatpush1.msra.mxu0 0.0
      %786 = vmatprep.subr.mxu0 0.0
      %787 = vmatpush1.msra.mxu0 0.0
      %788 = vmatprep.subr.mxu0 0.0
      %789 = vmatpush1.msra.mxu0 0.0
      %790 = vmatprep.subr.mxu0 0.0
      %791 = vmatpush1.msra.mxu0 0.0
      %792 = vmatprep.subr.mxu0 0.0
      %793 = vmatpush1.msra.mxu0 0.0
      %794 = vmatprep.subr.mxu0 0.0
      %795 = vmatpush1.msra.mxu0 0.0
      %796 = vmatprep.subr.mxu0 0.0
      %797 = vmatpush1.msra.mxu0 0.0
      %798 = vmatprep.subr.mxu0 0.0
      %799 = vmatpush1.msra.mxu0 0.0
      %800 = vmatprep.subr.mxu0 0.0
      %801 = vmatpush1.msra.mxu0 0.0
      %802 = vmatprep.subr.mxu0 0.0
      %803 = vmatpush1.msra.mxu0 0.0
      %804 = vmatprep.subr.mxu0 0.0
      %805 = vmatpush1.msra.mxu0 0.0
      %806 = vmatprep.subr.mxu0 0.0
      %807 = vmatpush1.msra.mxu0 0.0
      %808 = vmatprep.subr.mxu0 0.0
      %809 = vmatpush1.msra.mxu0 0.0
      %810 = vmatprep.subr.mxu0 0.0
      %811 = vmatpush1.msra.mxu0 0.0
      %812 = vmatprep.subr.mxu0 0.0
      %813 = vmatpush1.msra.mxu0 0.0
      %814 = vmatprep.subr.mxu0 0.0
      %815 = vmatpush1.msra.mxu0 0.0
      %816 = vmatprep.subr.mxu0 0.0
      %817 = vmatpush1.msra.mxu0 0.0
      %818 = vmatprep.mubr.f32.mxu0 0.0
      %819 = vmatmul.mubr.f32.gmra.mrb[0].mxu0 %v752
      %v820 = vpop.f32.mrb[0].mxu0
      %v821 = vadd.f32 0.0, %v820
      %v822 = vpop.f32.mrb[0].mxu0
      %823 = vdwg.mxu0
      %824 = vrot.lane.b32.xlu0 %v157, 112
      %v825 = vpop.permute.xlu0 %824
      %826 = vrot.lane.b32.xlu0 %v157, 80
      %v827 = vpop.permute.xlu0 %826
      %v828 = vsel %vm168, %v825, 0
      %v830 = vsel %vm168, %v827, 0
      %832 = vmatprep.subr.mxu0 0.0
      %833 = vmatpush1.xpose.msra.mxu0 %v830
      %834 = vmatprep.subr.mxu0 0.0
      %835 = vmatpush1.xpose.msra.mxu0 0.0
      %836 = vmatprep.subr.mxu0 0.0
      %837 = vmatpush1.xpose.msra.mxu0 0.0
      %838 = vmatprep.subr.mxu0 0.0
      %839 = vmatpush1.xpose.msra.mxu0 0.0
      %840 = vmatprep.subr.mxu0 0.0
      %841 = vmatpush1.xpose.msra.mxu0 0.0
      %842 = vmatprep.subr.mxu0 0.0
      %843 = vmatpush1.xpose.msra.mxu0 0.0
      %844 = vmatprep.subr.mxu0 0.0
      %845 = vmatpush1.xpose.msra.mxu0 0.0
      %846 = vmatprep.subr.mxu0 0.0
      %847 = vmatpush1.xpose.msra.mxu0 0.0
      %848 = vmatprep.subr.mxu0 0.0
      %849 = vmatpush1.xpose.msra.mxu0 0.0
      %850 = vmatprep.subr.mxu0 0.0
      %851 = vmatpush1.xpose.msra.mxu0 0.0
      %852 = vmatprep.subr.mxu0 0.0
      %853 = vmatpush1.xpose.msra.mxu0 0.0
      %854 = vmatprep.subr.mxu0 0.0
      %855 = vmatpush1.xpose.msra.mxu0 0.0
      %856 = vmatprep.subr.mxu0 0.0
      %857 = vmatpush1.xpose.msra.mxu0 0.0
      %858 = vmatprep.subr.mxu0 0.0
      %859 = vmatpush1.xpose.msra.mxu0 0.0
      %860 = vmatprep.subr.mxu0 0.0
      %861 = vmatpush1.xpose.msra.mxu0 0.0
      %862 = vmatprep.subr.mxu0 0.0
      %863 = vmatpush1.xpose.msra.mxu0 0.0
      %864 = vmatprep.subr.mxu0 0.0
      %865 = vmatpush1.xpose.msra.mxu0 0.0
      %866 = vmatprep.subr.mxu0 0.0
      %867 = vmatpush1.xpose.msra.mxu0 0.0
      %868 = vmatprep.subr.mxu0 0.0
      %869 = vmatpush1.xpose.msra.mxu0 0.0
      %870 = vmatprep.subr.mxu0 0.0
      %871 = vmatpush1.xpose.msra.mxu0 0.0
      %872 = vmatprep.subr.mxu0 0.0
      %873 = vmatpush1.xpose.msra.mxu0 0.0
      %874 = vmatprep.subr.mxu0 0.0
      %875 = vmatpush1.xpose.msra.mxu0 0.0
      %876 = vmatprep.subr.mxu0 0.0
      %877 = vmatpush1.xpose.msra.mxu0 0.0
      %878 = vmatprep.subr.mxu0 0.0
      %879 = vmatpush1.xpose.msra.mxu0 0.0
      %880 = vmatprep.subr.mxu0 0.0
      %881 = vmatpush1.xpose.msra.mxu0 0.0
      %882 = vmatprep.subr.mxu0 0.0
      %883 = vmatpush1.xpose.msra.mxu0 0.0
      %884 = vmatprep.subr.mxu0 0.0
      %885 = vmatpush1.xpose.msra.mxu0 0.0
      %886 = vmatprep.subr.mxu0 0.0
      %887 = vmatpush1.xpose.msra.mxu0 0.0
      %888 = vmatprep.subr.mxu0 0.0
      %889 = vmatpush1.xpose.msra.mxu0 0.0
      %890 = vmatprep.subr.mxu0 0.0
      %891 = vmatpush1.xpose.msra.mxu0 0.0
      %892 = vmatprep.subr.mxu0 0.0
      %893 = vmatpush1.xpose.msra.mxu0 0.0
      %894 = vmatprep.subr.mxu0 0.0
      %895 = vmatpush1.xpose.msra.mxu0 0.0
      %896 = vmatprep.mubr.f32.mxu0 0.0
      %897 = vmatmul.mubr.f32.gmra.mrb[0].mxu0 %v828
      %v898 = vpop.f32.mrb[0].mxu0
      %v899 = vadd.f32 0.0, %v898
      %v900 = vpop.f32.mrb[0].mxu0
      %901 = vdwg.mxu0
      %902 = vrot.lane.b32.xlu0 %v162, 112
      %v903 = vpop.permute.xlu0 %902
      %904 = vrot.lane.b32.xlu0 %v162, 80
      %v905 = vpop.permute.xlu0 %904
      %v906 = vsel %vm168, %v903, 0
      %v908 = vsel %vm168, %v905, 0
      %910 = vmatprep.subr.mxu0 0.0
      %911 = vmatpush1.xpose.msra.mxu0 %v908
      %912 = vmatprep.subr.mxu0 0.0
      %913 = vmatpush1.xpose.msra.mxu0 0.0
      %914 = vmatprep.subr.mxu0 0.0
      %915 = vmatpush1.xpose.msra.mxu0 0.0
      %916 = vmatprep.subr.mxu0 0.0
      %917 = vmatpush1.xpose.msra.mxu0 0.0
      %918 = vmatprep.subr.mxu0 0.0
      %919 = vmatpush1.xpose.msra.mxu0 0.0
      %920 = vmatprep.subr.mxu0 0.0
      %921 = vmatpush1.xpose.msra.mxu0 0.0
      %922 = vmatprep.subr.mxu0 0.0
      %923 = vmatpush1.xpose.msra.mxu0 0.0
      %924 = vmatprep.subr.mxu0 0.0
      %925 = vmatpush1.xpose.msra.mxu0 0.0
      %926 = vmatprep.subr.mxu0 0.0
      %927 = vmatpush1.xpose.msra.mxu0 0.0
      %928 = vmatprep.subr.mxu0 0.0
      %929 = vmatpush1.xpose.msra.mxu0 0.0
      %930 = vmatprep.subr.mxu0 0.0
      %931 = vmatpush1.xpose.msra.mxu0 0.0
      %932 = vmatprep.subr.mxu0 0.0
      %933 = vmatpush1.xpose.msra.mxu0 0.0
      %934 = vmatprep.subr.mxu0 0.0
      %935 = vmatpush1.xpose.msra.mxu0 0.0
      %936 = vmatprep.subr.mxu0 0.0
      %937 = vmatpush1.xpose.msra.mxu0 0.0
      %938 = vmatprep.subr.mxu0 0.0
      %939 = vmatpush1.xpose.msra.mxu0 0.0
      %940 = vmatprep.subr.mxu0 0.0
      %941 = vmatpush1.xpose.msra.mxu0 0.0
      %942 = vmatprep.subr.mxu0 0.0
      %943 = vmatpush1.xpose.msra.mxu0 0.0
      %944 = vmatprep.subr.mxu0 0.0
      %945 = vmatpush1.xpose.msra.mxu0 0.0
      %946 = vmatprep.subr.mxu0 0.0
      %947 = vmatpush1.xpose.msra.mxu0 0.0
      %948 = vmatprep.subr.mxu0 0.0
      %949 = vmatpush1.xpose.msra.mxu0 0.0
      %950 = vmatprep.subr.mxu0 0.0
      %951 = vmatpush1.xpose.msra.mxu0 0.0
      %952 = vmatprep.subr.mxu0 0.0
      %953 = vmatpush1.xpose.msra.mxu0 0.0
      %954 = vmatprep.subr.mxu0 0.0
      %955 = vmatpush1.xpose.msra.mxu0 0.0
      %956 = vmatprep.subr.mxu0 0.0
      %957 = vmatpush1.xpose.msra.mxu0 0.0
      %958 = vmatprep.subr.mxu0 0.0
      %959 = vmatpush1.xpose.msra.mxu0 0.0
      %960 = vmatprep.subr.mxu0 0.0
      %961 = vmatpush1.xpose.msra.mxu0 0.0
      %962 = vmatprep.subr.mxu0 0.0
      %963 = vmatpush1.xpose.msra.mxu0 0.0
      %964 = vmatprep.subr.mxu0 0.0
      %965 = vmatpush1.xpose.msra.mxu0 0.0
      %966 = vmatprep.subr.mxu0 0.0
      %967 = vmatpush1.xpose.msra.mxu0 0.0
      %968 = vmatprep.subr.mxu0 0.0
      %969 = vmatpush1.xpose.msra.mxu0 0.0
      %970 = vmatprep.subr.mxu0 0.0
      %971 = vmatpush1.xpose.msra.mxu0 0.0
      %972 = vmatprep.subr.mxu0 0.0
      %973 = vmatpush1.xpose.msra.mxu0 0.0
      %974 = vmatprep.mubr.f32.mxu0 0.0
      %975 = vmatmul.mubr.f32.gmra.mrb[0].mxu0 %v906
      %v976 = vpop.f32.mrb[0].mxu0
      %v977 = vadd.f32 0.0, %v976
      %v978 = vpop.f32.mrb[0].mxu0
      %979 = vdwg.mxu0
      %v980 = vsel %vm168, %v899, -inf
      %981 = vmax.xlane.f32.xlu0 %v980
      %v982 = vpop.xlane.xlu0 %981
      %v983 = vsel %vm168, %v977, -inf
      %984 = vmax.xlane.f32.xlu0 %v983
      %v985 = vpop.xlane.xlu0 %984
      %v986 = vsub.f32 %v899, %v982
      %v987 = vsub.f32 %v977, %v985
      %v988 = vmul.f32 %v986, 1.442695
      %v989 = vpow.pop %v988
      %v990 = vmul.f32 %v987, 1.442695
      %v991 = vpow.pop %v990
      %v992 = vsel %vm168, %v989, 0.0
      %993 = vadd.xlane.f32.xlu0 %v992
      %v994 = vpop.xlane.xlu0 %993
      %v995 = vsel %vm168, %v991, 0.0
      %996 = vadd.xlane.f32.xlu0 %v995
      %v997 = vpop.xlane.xlu0 %996
      %v998 = vrcp.pop %v994
      %v999 = vrcp.pop %v997
      %v1000 = vmul.f32 %v989, %v998
      %v1001 = vmul.f32 %v991, %v999
      %1002 = vrot.lane.b32.xlu0 %v157, 48
      %v1003 = vpop.permute.xlu0 %1002
      %v1006 = vsel %vm168, %v1000, 0
      %1008 = vmatprep.subr.mxu0 0.0
      %1009 = vmatpush1.msra.mxu0 %v1003
      %1010 = vmatprep.subr.mxu0 0.0
      %1011 = vmatpush1.msra.mxu0 0.0
      %1012 = vmatprep.subr.mxu0 0.0
      %1013 = vmatpush1.msra.mxu0 0.0
      %1014 = vmatprep.subr.mxu0 0.0
      %1015 = vmatpush1.msra.mxu0 0.0
      %1016 = vmatprep.subr.mxu0 0.0
      %1017 = vmatpush1.msra.mxu0 0.0
      %1018 = vmatprep.subr.mxu0 0.0
      %1019 = vmatpush1.msra.mxu0 0.0
      %1020 = vmatprep.subr.mxu0 0.0
      %1021 = vmatpush1.msra.mxu0 0.0
      %1022 = vmatprep.subr.mxu0 0.0
      %1023 = vmatpush1.msra.mxu0 0.0
      %1024 = vmatprep.subr.mxu0 0.0
      %1025 = vmatpush1.msra.mxu0 0.0
      %1026 = vmatprep.subr.mxu0 0.0
      %1027 = vmatpush1.msra.mxu0 0.0
      %1028 = vmatprep.subr.mxu0 0.0
      %1029 = vmatpush1.msra.mxu0 0.0
      %1030 = vmatprep.subr.mxu0 0.0
      %1031 = vmatpush1.msra.mxu0 0.0
      %1032 = vmatprep.subr.mxu0 0.0
      %1033 = vmatpush1.msra.mxu0 0.0
      %1034 = vmatprep.subr.mxu0 0.0
      %1035 = vmatpush1.msra.mxu0 0.0
      %1036 = vmatprep.subr.mxu0 0.0
      %1037 = vmatpush1.msra.mxu0 0.0
      %1038 = vmatprep.subr.mxu0 0.0
      %1039 = vmatpush1.msra.mxu0 0.0
      %1040 = vmatprep.subr.mxu0 0.0
      %1041 = vmatpush1.msra.mxu0 0.0
      %1042 = vmatprep.subr.mxu0 0.0
      %1043 = vmatpush1.msra.mxu0 0.0
      %1044 = vmatprep.subr.mxu0 0.0
      %1045 = vmatpush1.msra.mxu0 0.0
      %1046 = vmatprep.subr.mxu0 0.0
      %1047 = vmatpush1.msra.mxu0 0.0
      %1048 = vmatprep.subr.mxu0 0.0
      %1049 = vmatpush1.msra.mxu0 0.0
      %1050 = vmatprep.subr.mxu0 0.0
      %1051 = vmatpush1.msra.mxu0 0.0
      %1052 = vmatprep.subr.mxu0 0.0
      %1053 = vmatpush1.msra.mxu0 0.0
      %1054 = vmatprep.subr.mxu0 0.0
      %1055 = vmatpush1.msra.mxu0 0.0
      %1056 = vmatprep.subr.mxu0 0.0
      %1057 = vmatpush1.msra.mxu0 0.0
      %1058 = vmatprep.subr.mxu0 0.0
      %1059 = vmatpush1.msra.mxu0 0.0
      %1060 = vmatprep.subr.mxu0 0.0
      %1061 = vmatpush1.msra.mxu0 0.0
      %1062 = vmatprep.subr.mxu0 0.0
      %1063 = vmatpush1.msra.mxu0 0.0
      %1064 = vmatprep.subr.mxu0 0.0
      %1065 = vmatpush1.msra.mxu0 0.0
      %1066 = vmatprep.subr.mxu0 0.0
      %1067 = vmatpush1.msra.mxu0 0.0
      %1068 = vmatprep.subr.mxu0 0.0
      %1069 = vmatpush1.msra.mxu0 0.0
      %1070 = vmatprep.subr.mxu0 0.0
      %1071 = vmatpush1.msra.mxu0 0.0
      %1072 = vmatprep.mubr.f32.mxu0 0.0
      %1073 = vmatmul.mubr.f32.gmra.mrb[0].mxu0 %v1006
      %v1074 = vpop.f32.mrb[0].mxu0
      %v1075 = vadd.f32 0.0, %v1074
      %v1076 = vpop.f32.mrb[0].mxu0
      %1077 = vdwg.mxu0
      %1078 = vrot.lane.b32.xlu0 %v162, 48
      %v1079 = vpop.permute.xlu0 %1078
      %v1082 = vsel %vm168, %v1001, 0
      %1084 = vmatprep.subr.mxu0 0.0
      %1085 = vmatpush1.msra.mxu0 %v1079
      %1086 = vmatprep.subr.mxu0 0.0
      %1087 = vmatpush1.msra.mxu0 0.0
      %1088 = vmatprep.subr.mxu0 0.0
      %1089 = vmatpush1.msra.mxu0 0.0
      %1090 = vmatprep.subr.mxu0 0.0
      %1091 = vmatpush1.msra.mxu0 0.0
      %1092 = vmatprep.subr.mxu0 0.0
      %1093 = vmatpush1.msra.mxu0 0.0
      %1094 = vmatprep.subr.mxu0 0.0
      %1095 = vmatpush1.msra.mxu0 0.0
      %1096 = vmatprep.subr.mxu0 0.0
      %1097 = vmatpush1.msra.mxu0 0.0
      %1098 = vmatprep.subr.mxu0 0.0
      %1099 = vmatpush1.msra.mxu0 0.0
      %1100 = vmatprep.subr.mxu0 0.0
      %1101 = vmatpush1.msra.mxu0 0.0
      %1102 = vmatprep.subr.mxu0 0.0
      %1103 = vmatpush1.msra.mxu0 0.0
      %1104 = vmatprep.subr.mxu0 0.0
      %1105 = vmatpush1.msra.mxu0 0.0
      %1106 = vmatprep.subr.mxu0 0.0
      %1107 = vmatpush1.msra.mxu0 0.0
      %1108 = vmatprep.subr.mxu0 0.0
      %1109 = vmatpush1.msra.mxu0 0.0
      %1110 = vmatprep.subr.mxu0 0.0
      %1111 = vmatpush1.msra.mxu0 0.0
      %1112 = vmatprep.subr.mxu0 0.0
      %1113 = vmatpush1.msra.mxu0 0.0
      %1114 = vmatprep.subr.mxu0 0.0
      %1115 = vmatpush1.msra.mxu0 0.0
      %1116 = vmatprep.subr.mxu0 0.0
      %1117 = vmatpush1.msra.mxu0 0.0
      %1118 = vmatprep.subr.mxu0 0.0
      %1119 = vmatpush1.msra.mxu0 0.0
      %1120 = vmatprep.subr.mxu0 0.0
      %1121 = vmatpush1.msra.mxu0 0.0
      %1122 = vmatprep.subr.mxu0 0.0
      %1123 = vmatpush1.msra.mxu0 0.0
      %1124 = vmatprep.subr.mxu0 0.0
      %1125 = vmatpush1.msra.mxu0 0.0
      %1126 = vmatprep.subr.mxu0 0.0
      %1127 = vmatpush1.msra.mxu0 0.0
      %1128 = vmatprep.subr.mxu0 0.0
      %1129 = vmatpush1.msra.mxu0 0.0
      %1130 = vmatprep.subr.mxu0 0.0
      %1131 = vmatpush1.msra.mxu0 0.0
      %1132 = vmatprep.subr.mxu0 0.0
      %1133 = vmatpush1.msra.mxu0 0.0
      %1134 = vmatprep.subr.mxu0 0.0
      %1135 = vmatpush1.msra.mxu0 0.0
      %1136 = vmatprep.subr.mxu0 0.0
      %1137 = vmatpush1.msra.mxu0 0.0
      %1138 = vmatprep.subr.mxu0 0.0
      %1139 = vmatpush1.msra.mxu0 0.0
      %1140 = vmatprep.subr.mxu0 0.0
      %1141 = vmatpush1.msra.mxu0 0.0
      %1142 = vmatprep.subr.mxu0 0.0
      %1143 = vmatpush1.msra.mxu0 0.0
      %1144 = vmatprep.subr.mxu0 0.0
      %1145 = vmatpush1.msra.mxu0 0.0
      %1146 = vmatprep.subr.mxu0 0.0
      %1147 = vmatpush1.msra.mxu0 0.0
      %1148 = vmatprep.mubr.f32.mxu0 0.0
      %1149 = vmatmul.mubr.f32.gmra.mrb[0].mxu0 %v1082
      %v1150 = vpop.f32.mrb[0].mxu0
      %v1151 = vadd.f32 0.0, %v1150
      %v1152 = vpop.f32.mrb[0].mxu0
      %1153 = vdwg.mxu0
      %1154 = vrot.lane.b32.xlu0 %v157, 104
      %v1155 = vpop.permute.xlu0 %1154
      %1156 = vrot.lane.b32.xlu0 %v157, 72
      %v1157 = vpop.permute.xlu0 %1156
      %v1158 = vsel %vm168, %v1155, 0
      %v1160 = vsel %vm168, %v1157, 0
      %1162 = vmatprep.subr.mxu0 0.0
      %1163 = vmatpush1.xpose.msra.mxu0 %v1160
      %1164 = vmatprep.subr.mxu0 0.0
      %1165 = vmatpush1.xpose.msra.mxu0 0.0
      %1166 = vmatprep.subr.mxu0 0.0
      %1167 = vmatpush1.xpose.msra.mxu0 0.0
      %1168 = vmatprep.subr.mxu0 0.0
      %1169 = vmatpush1.xpose.msra.mxu0 0.0
      %1170 = vmatprep.subr.mxu0 0.0
      %1171 = vmatpush1.xpose.msra.mxu0 0.0
      %1172 = vmatprep.subr.mxu0 0.0
      %1173 = vmatpush1.xpose.msra.mxu0 0.0
      %1174 = vmatprep.subr.mxu0 0.0
      %1175 = vmatpush1.xpose.msra.mxu0 0.0
      %1176 = vmatprep.subr.mxu0 0.0
      %1177 = vmatpush1.xpose.msra.mxu0 0.0
      %1178 = vmatprep.subr.mxu0 0.0
      %1179 = vmatpush1.xpose.msra.mxu0 0.0
      %1180 = vmatprep.subr.mxu0 0.0
      %1181 = vmatpush1.xpose.msra.mxu0 0.0
      %1182 = vmatprep.subr.mxu0 0.0
      %1183 = vmatpush1.xpose.msra.mxu0 0.0
      %1184 = vmatprep.subr.mxu0 0.0
      %1185 = vmatpush1.xpose.msra.mxu0 0.0
      %1186 = vmatprep.subr.mxu0 0.0
      %1187 = vmatpush1.xpose.msra.mxu0 0.0
      %1188 = vmatprep.subr.mxu0 0.0
      %1189 = vmatpush1.xpose.msra.mxu0 0.0
      %1190 = vmatprep.subr.mxu0 0.0
      %1191 = vmatpush1.xpose.msra.mxu0 0.0
      %1192 = vmatprep.subr.mxu0 0.0
      %1193 = vmatpush1.xpose.msra.mxu0 0.0
      %1194 = vmatprep.subr.mxu0 0.0
      %1195 = vmatpush1.xpose.msra.mxu0 0.0
      %1196 = vmatprep.subr.mxu0 0.0
      %1197 = vmatpush1.xpose.msra.mxu0 0.0
      %1198 = vmatprep.subr.mxu0 0.0
      %1199 = vmatpush1.xpose.msra.mxu0 0.0
      %1200 = vmatprep.subr.mxu0 0.0
      %1201 = vmatpush1.xpose.msra.mxu0 0.0
      %1202 = vmatprep.subr.mxu0 0.0
      %1203 = vmatpush1.xpose.msra.mxu0 0.0
      %1204 = vmatprep.subr.mxu0 0.0
      %1205 = vmatpush1.xpose.msra.mxu0 0.0
      %1206 = vmatprep.subr.mxu0 0.0
      %1207 = vmatpush1.xpose.msra.mxu0 0.0
      %1208 = vmatprep.subr.mxu0 0.0
      %1209 = vmatpush1.xpose.msra.mxu0 0.0
      %1210 = vmatprep.subr.mxu0 0.0
      %1211 = vmatpush1.xpose.msra.mxu0 0.0
      %1212 = vmatprep.subr.mxu0 0.0
      %1213 = vmatpush1.xpose.msra.mxu0 0.0
      %1214 = vmatprep.subr.mxu0 0.0
      %1215 = vmatpush1.xpose.msra.mxu0 0.0
      %1216 = vmatprep.subr.mxu0 0.0
      %1217 = vmatpush1.xpose.msra.mxu0 0.0
      %1218 = vmatprep.subr.mxu0 0.0
      %1219 = vmatpush1.xpose.msra.mxu0 0.0
      %1220 = vmatprep.subr.mxu0 0.0
      %1221 = vmatpush1.xpose.msra.mxu0 0.0
      %1222 = vmatprep.subr.mxu0 0.0
      %1223 = vmatpush1.xpose.msra.mxu0 0.0
      %1224 = vmatprep.subr.mxu0 0.0
      %1225 = vmatpush1.xpose.msra.mxu0 0.0
      %1226 = vmatprep.mubr.f32.mxu0 0.0
      %1227 = vmatmul.mubr.f32.gmra.mrb[0].mxu0 %v1158
      %v1228 = vpop.f32.mrb[0].mxu0
      %v1229 = vadd.f32 0.0, %v1228
      %v1230 = vpop.f32.mrb[0].mxu0
      %1231 = vdwg.mxu0
      %1232 = vrot.lane.b32.xlu0 %v162, 104
      %v1233 = vpop.permute.xlu0 %1232
      %1234 = vrot.lane.b32.xlu0 %v162, 72
      %v1235 = vpop.permute.xlu0 %1234
      %v1236 = vsel %vm168, %v1233, 0
      %v1238 = vsel %vm168, %v1235, 0
      %1240 = vmatprep.subr.mxu0 0.0
      %1241 = vmatpush1.xpose.msra.mxu0 %v1238
      %1242 = vmatprep.subr.mxu0 0.0
      %1243 = vmatpush1.xpose.msra.mxu0 0.0
      %1244 = vmatprep.subr.mxu0 0.0
      %1245 = vmatpush1.xpose.msra.mxu0 0.0
      %1246 = vmatprep.subr.mxu0 0.0
      %1247 = vmatpush1.xpose.msra.mxu0 0.0
      %1248 = vmatprep.subr.mxu0 0.0
      %1249 = vmatpush1.xpose.msra.mxu0 0.0
      %1250 = vmatprep.subr.mxu0 0.0
      %1251 = vmatpush1.xpose.msra.mxu0 0.0
      %1252 = vmatprep.subr.mxu0 0.0
      %1253 = vmatpush1.xpose.msra.mxu0 0.0
      %1254 = vmatprep.subr.mxu0 0.0
      %1255 = vmatpush1.xpose.msra.mxu0 0.0
      %1256 = vmatprep.subr.mxu0 0.0
      %1257 = vmatpush1.xpose.msra.mxu0 0.0
      %1258 = vmatprep.subr.mxu0 0.0
      %1259 = vmatpush1.xpose.msra.mxu0 0.0
      %1260 = vmatprep.subr.mxu0 0.0
      %1261 = vmatpush1.xpose.msra.mxu0 0.0
      %1262 = vmatprep.subr.mxu0 0.0
      %1263 = vmatpush1.xpose.msra.mxu0 0.0
      %1264 = vmatprep.subr.mxu0 0.0
      %1265 = vmatpush1.xpose.msra.mxu0 0.0
      %1266 = vmatprep.subr.mxu0 0.0
      %1267 = vmatpush1.xpose.msra.mxu0 0.0
      %1268 = vmatprep.subr.mxu0 0.0
      %1269 = vmatpush1.xpose.msra.mxu0 0.0
      %1270 = vmatprep.subr.mxu0 0.0
      %1271 = vmatpush1.xpose.msra.mxu0 0.0
      %1272 = vmatprep.subr.mxu0 0.0
      %1273 = vmatpush1.xpose.msra.mxu0 0.0
      %1274 = vmatprep.subr.mxu0 0.0
      %1275 = vmatpush1.xpose.msra.mxu0 0.0
      %1276 = vmatprep.subr.mxu0 0.0
      %1277 = vmatpush1.xpose.msra.mxu0 0.0
      %1278 = vmatprep.subr.mxu0 0.0
      %1279 = vmatpush1.xpose.msra.mxu0 0.0
      %1280 = vmatprep.subr.mxu0 0.0
      %1281 = vmatpush1.xpose.msra.mxu0 0.0
      %1282 = vmatprep.subr.mxu0 0.0
      %1283 = vmatpush1.xpose.msra.mxu0 0.0
      %1284 = vmatprep.subr.mxu0 0.0
      %1285 = vmatpush1.xpose.msra.mxu0 0.0
      %1286 = vmatprep.subr.mxu0 0.0
      %1287 = vmatpush1.xpose.msra.mxu0 0.0
      %1288 = vmatprep.subr.mxu0 0.0
      %1289 = vmatpush1.xpose.msra.mxu0 0.0
      %1290 = vmatprep.subr.mxu0 0.0
      %1291 = vmatpush1.xpose.msra.mxu0 0.0
      %1292 = vmatprep.subr.mxu0 0.0
      %1293 = vmatpush1.xpose.msra.mxu0 0.0
      %1294 = vmatprep.subr.mxu0 0.0
      %1295 = vmatpush1.xpose.msra.mxu0 0.0
      %1296 = vmatprep.subr.mxu0 0.0
      %1297 = vmatpush1.xpose.msra.mxu0 0.0
      %1298 = vmatprep.subr.mxu0 0.0
      %1299 = vmatpush1.xpose.msra.mxu0 0.0
      %1300 = vmatprep.subr.mxu0 0.0
      %1301 = vmatpush1.xpose.msra.mxu0 0.0
      %1302 = vmatprep.subr.mxu0 0.0
      %1303 = vmatpush1.xpose.msra.mxu0 0.0
      %1304 = vmatprep.mubr.f32.mxu0 0.0
      %1305 = vmatmul.mubr.f32.gmra.mrb[0].mxu0 %v1236
      %v1306 = vpop.f32.mrb[0].mxu0
      %v1307 = vadd.f32 0.0, %v1306
      %v1308 = vpop.f32.mrb[0].mxu0
      %1309 = vdwg.mxu0
      %v1310 = vsel %vm168, %v1229, -inf
      %1311 = vmax.xlane.f32.xlu0 %v1310
      %v1312 = vpop.xlane.xlu0 %1311
      %v1313 = vsel %vm168, %v1307, -inf
      %1314 = vmax.xlane.f32.xlu0 %v1313
      %v1315 = vpop.xlane.xlu0 %1314
      %v1316 = vsub.f32 %v1229, %v1312
      %v1317 = vsub.f32 %v1307, %v1315
      %v1318 = vmul.f32 %v1316, 1.442695
      %v1319 = vpow.pop %v1318
      %v1320 = vmul.f32 %v1317, 1.442695
      %v1321 = vpow.pop %v1320
      %v1322 = vsel %vm168, %v1319, 0.0
      %1323 = vadd.xlane.f32.xlu0 %v1322
      %v1324 = vpop.xlane.xlu0 %1323
      %v1325 = vsel %vm168, %v1321, 0.0
      %1326 = vadd.xlane.f32.xlu0 %v1325
      %v1327 = vpop.xlane.xlu0 %1326
      %v1328 = vrcp.pop %v1324
      %v1329 = vrcp.pop %v1327
      %v1330 = vmul.f32 %v1319, %v1328
      %v1331 = vmul.f32 %v1321, %v1329
      %1332 = vrot.lane.b32.xlu0 %v157, 40
      %v1333 = vpop.permute.xlu0 %1332
      %v1336 = vsel %vm168, %v1330, 0
      %1338 = vmatprep.subr.mxu0 0.0
      %1339 = vmatpush1.msra.mxu0 %v1333
      %1340 = vmatprep.subr.mxu0 0.0
      %1341 = vmatpush1.msra.mxu0 0.0
      %1342 = vmatprep.subr.mxu0 0.0
      %1343 = vmatpush1.msra.mxu0 0.0
      %1344 = vmatprep.subr.mxu0 0.0
      %1345 = vmatpush1.msra.mxu0 0.0
      %1346 = vmatprep.subr.mxu0 0.0
      %1347 = vmatpush1.msra.mxu0 0.0
      %1348 = vmatprep.subr.mxu0 0.0
      %1349 = vmatpush1.msra.mxu0 0.0
      %1350 = vmatprep.subr.mxu0 0.0
      %1351 = vmatpush1.msra.mxu0 0.0
      %1352 = vmatprep.subr.mxu0 0.0
      %1353 = vmatpush1.msra.mxu0 0.0
      %1354 = vmatprep.subr.mxu0 0.0
      %1355 = vmatpush1.msra.mxu0 0.0
      %1356 = vmatprep.subr.mxu0 0.0
      %1357 = vmatpush1.msra.mxu0 0.0
      %1358 = vmatprep.subr.mxu0 0.0
      %1359 = vmatpush1.msra.mxu0 0.0
      %1360 = vmatprep.subr.mxu0 0.0
      %1361 = vmatpush1.msra.mxu0 0.0
      %1362 = vmatprep.subr.mxu0 0.0
      %1363 = vmatpush1.msra.mxu0 0.0
      %1364 = vmatprep.subr.mxu0 0.0
      %1365 = vmatpush1.msra.mxu0 0.0
      %1366 = vmatprep.subr.mxu0 0.0
      %1367 = vmatpush1.msra.mxu0 0.0
      %1368 = vmatprep.subr.mxu0 0.0
      %1369 = vmatpush1.msra.mxu0 0.0
      %1370 = vmatprep.subr.mxu0 0.0
      %1371 = vmatpush1.msra.mxu0 0.0
      %1372 = vmatprep.subr.mxu0 0.0
      %1373 = vmatpush1.msra.mxu0 0.0
      %1374 = vmatprep.subr.mxu0 0.0
      %1375 = vmatpush1.msra.mxu0 0.0
      %1376 = vmatprep.subr.mxu0 0.0
      %1377 = vmatpush1.msra.mxu0 0.0
      %1378 = vmatprep.subr.mxu0 0.0
      %1379 = vmatpush1.msra.mxu0 0.0
      %1380 = vmatprep.subr.mxu0 0.0
      %1381 = vmatpush1.msra.mxu0 0.0
      %1382 = vmatprep.subr.mxu0 0.0
      %1383 = vmatpush1.msra.mxu0 0.0
      %1384 = vmatprep.subr.mxu0 0.0
      %1385 = vmatpush1.msra.mxu0 0.0
      %1386 = vmatprep.subr.mxu0 0.0
      %1387 = vmatpush1.msra.mxu0 0.0
      %1388 = vmatprep.subr.mxu0 0.0
      %1389 = vmatpush1.msra.mxu0 0.0
      %1390 = vmatprep.subr.mxu0 0.0
      %1391 = vmatpush1.msra.mxu0 0.0
      %1392 = vmatprep.subr.mxu0 0.0
      %1393 = vmatpush1.msra.mxu0 0.0
      %1394 = vmatprep.subr.mxu0 0.0
      %1395 = vmatpush1.msra.mxu0 0.0
      %1396 = vmatprep.subr.mxu0 0.0
      %1397 = vmatpush1.msra.mxu0 0.0
      %1398 = vmatprep.subr.mxu0 0.0
      %1399 = vmatpush1.msra.mxu0 0.0
      %1400 = vmatprep.subr.mxu0 0.0
      %1401 = vmatpush1.msra.mxu0 0.0
      %1402 = vmatprep.mubr.f32.mxu0 0.0
      %1403 = vmatmul.mubr.f32.gmra.mrb[0].mxu0 %v1336
      %v1404 = vpop.f32.mrb[0].mxu0
      %v1405 = vadd.f32 0.0, %v1404
      %v1406 = vpop.f32.mrb[0].mxu0
      %1407 = vdwg.mxu0
      %1408 = vrot.lane.b32.xlu0 %v162, 40
      %v1409 = vpop.permute.xlu0 %1408
      %v1412 = vsel %vm168, %v1331, 0
      %1414 = vmatprep.subr.mxu0 0.0
      %1415 = vmatpush1.msra.mxu0 %v1409
      %1416 = vmatprep.subr.mxu0 0.0
      %1417 = vmatpush1.msra.mxu0 0.0
      %1418 = vmatprep.subr.mxu0 0.0
      %1419 = vmatpush1.msra.mxu0 0.0
      %1420 = vmatprep.subr.mxu0 0.0
      %1421 = vmatpush1.msra.mxu0 0.0
      %1422 = vmatprep.subr.mxu0 0.0
      %1423 = vmatpush1.msra.mxu0 0.0
      %1424 = vmatprep.subr.mxu0 0.0
      %1425 = vmatpush1.msra.mxu0 0.0
      %1426 = vmatprep.subr.mxu0 0.0
      %1427 = vmatpush1.msra.mxu0 0.0
      %1428 = vmatprep.subr.mxu0 0.0
      %1429 = vmatpush1.msra.mxu0 0.0
      %1430 = vmatprep.subr.mxu0 0.0
      %1431 = vmatpush1.msra.mxu0 0.0
      %1432 = vmatprep.subr.mxu0 0.0
      %1433 = vmatpush1.msra.mxu0 0.0
      %1434 = vmatprep.subr.mxu0 0.0
      %1435 = vmatpush1.msra.mxu0 0.0
      %1436 = vmatprep.subr.mxu0 0.0
      %1437 = vmatpush1.msra.mxu0 0.0
      %1438 = vmatprep.subr.mxu0 0.0
      %1439 = vmatpush1.msra.mxu0 0.0
      %1440 = vmatprep.subr.mxu0 0.0
      %1441 = vmatpush1.msra.mxu0 0.0
      %1442 = vmatprep.subr.mxu0 0.0
      %1443 = vmatpush1.msra.mxu0 0.0
      %1444 = vmatprep.subr.mxu0 0.0
      %1445 = vmatpush1.msra.mxu0 0.0
      %1446 = vmatprep.subr.mxu0 0.0
      %1447 = vmatpush1.msra.mxu0 0.0
      %1448 = vmatprep.subr.mxu0 0.0
      %1449 = vmatpush1.msra.mxu0 0.0
      %1450 = vmatprep.subr.mxu0 0.0
      %1451 = vmatpush1.msra.mxu0 0.0
      %1452 = vmatprep.subr.mxu0 0.0
      %1453 = vmatpush1.msra.mxu0 0.0
      %1454 = vmatprep.subr.mxu0 0.0
      %1455 = vmatpush1.msra.mxu0 0.0
      %1456 = vmatprep.subr.mxu0 0.0
      %1457 = vmatpush1.msra.mxu0 0.0
      %1458 = vmatprep.subr.mxu0 0.0
      %1459 = vmatpush1.msra.mxu0 0.0
      %1460 = vmatprep.subr.mxu0 0.0
      %1461 = vmatpush1.msra.mxu0 0.0
      %1462 = vmatprep.subr.mxu0 0.0
      %1463 = vmatpush1.msra.mxu0 0.0
      %1464 = vmatprep.subr.mxu0 0.0
      %1465 = vmatpush1.msra.mxu0 0.0
      %1466 = vmatprep.subr.mxu0 0.0
      %1467 = vmatpush1.msra.mxu0 0.0
      %1468 = vmatprep.subr.mxu0 0.0
      %1469 = vmatpush1.msra.mxu0 0.0
      %1470 = vmatprep.subr.mxu0 0.0
      %1471 = vmatpush1.msra.mxu0 0.0
      %1472 = vmatprep.subr.mxu0 0.0
      %1473 = vmatpush1.msra.mxu0 0.0
      %1474 = vmatprep.subr.mxu0 0.0
      %1475 = vmatpush1.msra.mxu0 0.0
      %1476 = vmatprep.subr.mxu0 0.0
      %1477 = vmatpush1.msra.mxu0 0.0
      %1478 = vmatprep.mubr.f32.mxu0 0.0
      %1479 = vmatmul.mubr.f32.gmra.mrb[0].mxu0 %v1412
      %v1480 = vpop.f32.mrb[0].mxu0
      %v1481 = vadd.f32 0.0, %v1480
      %v1482 = vpop.f32.mrb[0].mxu0
      %1483 = vdwg.mxu0
      %1486 = vrot.lane.b32.xlu0 %v745, 8
      %v1487 = vpop.permute.xlu0 %1486
      %1488 = vrot.lane.b32.xlu0 %v821, 8
      %v1489 = vpop.permute.xlu0 %1488
      %1494 = vrot.lane.b32.xlu0 %v1075, 16
      %v1495 = vpop.permute.xlu0 %1494
      %1496 = vrot.lane.b32.xlu0 %v1151, 16
      %v1497 = vpop.permute.xlu0 %1496
      %1502 = vrot.lane.b32.xlu0 %v1405, 24
      %v1503 = vpop.permute.xlu0 %1502
      %1504 = vrot.lane.b32.xlu0 %v1481, 24
      %v1505 = vpop.permute.xlu0 %1504
      %v1508 = vsel %vm168, %v415, %v1487
      %v1509 = vsel %vm168, %v491, %v1489
      %vm1510 = vcmask 130048
      %v1511 = vsel %vm1510, %v1508, %v1495
      %v1512 = vsel %vm1510, %v1509, %v1497
      %vm1513 = vcmask 195584
      %v1514 = vsel %vm1513, %v1511, %v1503
      %v1515 = vsel %vm1513, %v1512, %v1505
      %v1516 = vlaneseq
      %v1517 = vshrl.u32 %v1516, 7
      %v1518 = vsub.s32 0, %v1517
      %v1519 = vrot.slane %v66, %v1518
      %v1521 = vsel %vm83, %v1514, 0
      %v1524 = vsel %vm83, %v1515, 0
      %1526 = vmatprep.subr.mxu0 0.0
      %1527 = vmatpush1.msra.mxu0 %v49
      %1528 = vmatprep.subr.mxu0 0.0
      %1529 = vmatpush1.msra.mxu0 %v50
      %1530 = vmatprep.subr.mxu0 0.0
      %1531 = vmatpush1.msra.mxu0 %v51
      %1532 = vmatprep.subr.mxu0 0.0
      %1533 = vmatpush1.msra.mxu0 %v52
      %1534 = vmatprep.subr.mxu0 0.0
      %1535 = vmatpush1.msra.mxu0 0.0
      %1536 = vmatprep.subr.mxu0 0.0
      %1537 = vmatpush1.msra.mxu0 0.0
      %1538 = vmatprep.subr.mxu0 0.0
      %1539 = vmatpush1.msra.mxu0 0.0
      %1540 = vmatprep.subr.mxu0 0.0
      %1541 = vmatpush1.msra.mxu0 0.0
      %1542 = vmatprep.subr.mxu0 0.0
      %1543 = vmatpush1.msra.mxu0 0.0
      %1544 = vmatprep.subr.mxu0 0.0
      %1545 = vmatpush1.msra.mxu0 0.0
      %1546 = vmatprep.subr.mxu0 0.0
      %1547 = vmatpush1.msra.mxu0 0.0
      %1548 = vmatprep.subr.mxu0 0.0
      %1549 = vmatpush1.msra.mxu0 0.0
      %1550 = vmatprep.subr.mxu0 0.0
      %1551 = vmatpush1.msra.mxu0 0.0
      %1552 = vmatprep.subr.mxu0 0.0
      %1553 = vmatpush1.msra.mxu0 0.0
      %1554 = vmatprep.subr.mxu0 0.0
      %1555 = vmatpush1.msra.mxu0 0.0
      %1556 = vmatprep.subr.mxu0 0.0
      %1557 = vmatpush1.msra.mxu0 0.0
      %1558 = vmatprep.subr.mxu0 0.0
      %1559 = vmatpush1.msra.mxu0 0.0
      %1560 = vmatprep.subr.mxu0 0.0
      %1561 = vmatpush1.msra.mxu0 0.0
      %1562 = vmatprep.subr.mxu0 0.0
      %1563 = vmatpush1.msra.mxu0 0.0
      %1564 = vmatprep.subr.mxu0 0.0
      %1565 = vmatpush1.msra.mxu0 0.0
      %1566 = vmatprep.subr.mxu0 0.0
      %1567 = vmatpush1.msra.mxu0 0.0
      %1568 = vmatprep.subr.mxu0 0.0
      %1569 = vmatpush1.msra.mxu0 0.0
      %1570 = vmatprep.subr.mxu0 0.0
      %1571 = vmatpush1.msra.mxu0 0.0
      %1572 = vmatprep.subr.mxu0 0.0
      %1573 = vmatpush1.msra.mxu0 0.0
      %1574 = vmatprep.subr.mxu0 0.0
      %1575 = vmatpush1.msra.mxu0 0.0
      %1576 = vmatprep.subr.mxu0 0.0
      %1577 = vmatpush1.msra.mxu0 0.0
      %1578 = vmatprep.subr.mxu0 0.0
      %1579 = vmatpush1.msra.mxu0 0.0
      %1580 = vmatprep.subr.mxu0 0.0
      %1581 = vmatpush1.msra.mxu0 0.0
      %1582 = vmatprep.subr.mxu0 0.0
      %1583 = vmatpush1.msra.mxu0 0.0
      %1584 = vmatprep.subr.mxu0 0.0
      %1585 = vmatpush1.msra.mxu0 0.0
      %1586 = vmatprep.subr.mxu0 0.0
      %1587 = vmatpush1.msra.mxu0 0.0
      %1588 = vmatprep.subr.mxu0 0.0
      %1589 = vmatpush1.msra.mxu0 0.0
      %1590 = vmatprep.mubr.f32.mxu0 0.0
      %1591 = vmatmul.mubr.f32.gmra.mrb[0].mxu0 %v1521
      %v1592 = vpop.f32.mrb[0].mxu0
      %v1593 = vadd.f32 %v1519, %v1592
      %v1594 = vpop.f32.mrb[0].mxu0
      %1595 = vmatprep.mubr.f32.mxu0 0.0
      %1596 = vmatmul.mubr.f32.gmra.mrb[0].mxu0 %v1524
      %v1597 = vpop.f32.mrb[0].mxu0
      %v1598 = vadd.f32 %v1519, %v1597
      %v1599 = vpop.f32.mrb[0].mxu0
      %1600 = vdwg.mxu0
      %v1601 = vadd.f32 %v75, %v1593
      %v1602 = vadd.f32 %v76, %v1598
      %v1603 = vsel %vm83, %v1601, 0.0
      %1604 = vadd.xlane.f32.xlu0 %v1603
      %v1605 = vpop.xlane.xlu0 %1604
      %v1606 = vsel %vm83, %v1602, 0.0
      %1607 = vadd.xlane.f32.xlu0 %v1606
      %v1608 = vpop.xlane.xlu0 %1607
      %v1609 = vrcp.pop 32.0
      %v1610 = vmul.f32 %v1605, %v1609
      %v1611 = vmul.f32 %v1608, %v1609
      %v1612 = vsub.f32 %v1601, %v1610
      %v1613 = vsub.f32 %v1602, %v1611
      %v1614 = vmul.f32 %v1612, %v1612
      %v1615 = vmul.f32 %v1613, %v1613
      %v1616 = vsel %vm83, %v1614, 0.0
      %1617 = vadd.xlane.f32.xlu0 %v1616
      %v1618 = vpop.xlane.xlu0 %1617
      %v1619 = vsel %vm83, %v1615, 0.0
      %1620 = vadd.xlane.f32.xlu0 %v1619
      %v1621 = vpop.xlane.xlu0 %1620
      %v1622 = vmul.f32 %v1618, %v1609
      %v1623 = vmul.f32 %v1621, %v1609
      %v1624 = vadd.f32 %v1622, 1e-05
      %v1625 = vadd.f32 %v1623, 1e-05
      %v1626 = vrsqrt.pop %v1624
      %v1627 = vrsqrt.pop %v1625
      %v1628 = vmul.f32 %v1612, %v1626
      %v1629 = vmul.f32 %v1613, %v1627
      %v1630 = vlaneseq
      %v1631 = vshrl.u32 %v1630, 7
      %v1632 = vsub.s32 2, %v1631
      %v1633 = vrot.slane %v66, %v1632
      %v1634 = vmul.f32 %v1628, %v1633
      %v1635 = vmul.f32 %v1629, %v1633
      %v1636 = vlaneseq
      %v1637 = vshrl.u32 %v1636, 7
      %v1638 = vsub.s32 3, %v1637
      %v1639 = vrot.slane %v66, %v1638
      %v1640 = vadd.f32 %v1634, %v1639
      %v1641 = vadd.f32 %v1635, %v1639
      %v1643 = vlaneseq
      %v1644 = vshrl.u32 %v1643, 7
      %v1645 = vsub.s32 0, %v1644
      %v1646 = vrot.slane %v57, %v1645
      %v1649 = vsel %vm83, %v1640, 0
      %v1652 = vsel %vm83, %v1641, 0
      %1654 = vmatprep.subr.mxu0 0.0
      %1655 = vmatpush1.msra.mxu0 %v53
      %1656 = vmatprep.subr.mxu0 0.0
      %1657 = vmatpush1.msra.mxu0 %v54
      %1658 = vmatprep.subr.mxu0 0.0
      %1659 = vmatpush1.msra.mxu0 %v55
      %1660 = vmatprep.subr.mxu0 0.0
      %1661 = vmatpush1.msra.mxu0 %v56
      %1662 = vmatprep.subr.mxu0 0.0
      %1663 = vmatpush1.msra.mxu0 0.0
      %1664 = vmatprep.subr.mxu0 0.0
      %1665 = vmatpush1.msra.mxu0 0.0
      %1666 = vmatprep.subr.mxu0 0.0
      %1667 = vmatpush1.msra.mxu0 0.0
      %1668 = vmatprep.subr.mxu0 0.0
      %1669 = vmatpush1.msra.mxu0 0.0
      %1670 = vmatprep.subr.mxu0 0.0
      %1671 = vmatpush1.msra.mxu0 0.0
      %1672 = vmatprep.subr.mxu0 0.0
      %1673 = vmatpush1.msra.mxu0 0.0
      %1674 = vmatprep.subr.mxu0 0.0
      %1675 = vmatpush1.msra.mxu0 0.0
      %1676 = vmatprep.subr.mxu0 0.0
      %1677 = vmatpush1.msra.mxu0 0.0
      %1678 = vmatprep.subr.mxu0 0.0
      %1679 = vmatpush1.msra.mxu0 0.0
      %1680 = vmatprep.subr.mxu0 0.0
      %1681 = vmatpush1.msra.mxu0 0.0
      %1682 = vmatprep.subr.mxu0 0.0
      %1683 = vmatpush1.msra.mxu0 0.0
      %1684 = vmatprep.subr.mxu0 0.0
      %1685 = vmatpush1.msra.mxu0 0.0
      %1686 = vmatprep.subr.mxu0 0.0
      %1687 = vmatpush1.msra.mxu0 0.0
      %1688 = vmatprep.subr.mxu0 0.0
      %1689 = vmatpush1.msra.mxu0 0.0
      %1690 = vmatprep.subr.mxu0 0.0
      %1691 = vmatpush1.msra.mxu0 0.0
      %1692 = vmatprep.subr.mxu0 0.0
      %1693 = vmatpush1.msra.mxu0 0.0
      %1694 = vmatprep.subr.mxu0 0.0
      %1695 = vmatpush1.msra.mxu0 0.0
      %1696 = vmatprep.subr.mxu0 0.0
      %1697 = vmatpush1.msra.mxu0 0.0
      %1698 = vmatprep.subr.mxu0 0.0
      %1699 = vmatpush1.msra.mxu0 0.0
      %1700 = vmatprep.subr.mxu0 0.0
      %1701 = vmatpush1.msra.mxu0 0.0
      %1702 = vmatprep.subr.mxu0 0.0
      %1703 = vmatpush1.msra.mxu0 0.0
      %1704 = vmatprep.subr.mxu0 0.0
      %1705 = vmatpush1.msra.mxu0 0.0
      %1706 = vmatprep.subr.mxu0 0.0
      %1707 = vmatpush1.msra.mxu0 0.0
      %1708 = vmatprep.subr.mxu0 0.0
      %1709 = vmatpush1.msra.mxu0 0.0
      %1710 = vmatprep.subr.mxu0 0.0
      %1711 = vmatpush1.msra.mxu0 0.0
      %1712 = vmatprep.subr.mxu0 0.0
      %1713 = vmatpush1.msra.mxu0 0.0
      %1714 = vmatprep.subr.mxu0 0.0
      %1715 = vmatpush1.msra.mxu0 0.0
      %1716 = vmatprep.subr.mxu0 0.0
      %1717 = vmatpush1.msra.mxu0 0.0
      %1718 = vmatprep.mubr.f32.mxu0 0.0
      %1719 = vmatmul.mubr.f32.gmra.mrb[0].mxu0 %v1649
      %v1720 = vpop.f32.mrb[0].mxu0
      %v1721 = vadd.f32 %v1646, %v1720
      %v1722 = vpop.f32.mrb[0].mxu0
      %1723 = vmatprep.mubr.f32.mxu0 0.0
      %1724 = vmatmul.mubr.f32.gmra.mrb[0].mxu0 %v1652
      %v1725 = vpop.f32.mrb[0].mxu0
      %v1726 = vadd.f32 %v1646, %v1725
      %v1727 = vpop.f32.mrb[0].mxu0
      %1728 = vdwg.mxu0
      %v1729 = vmax.f32 %v1721, 0.0
      %v1730 = vmax.f32 %v1726, 0.0
      %v1731 = vlaneseq
      %v1732 = vshrl.u32 %v1731, 7
      %v1733 = vsub.s32 1, %v1732
      %v1734 = vrot.slane %v66, %v1733
      %vm1735 = vcmask 523264
      %v1737 = vsel %vm1735, %v1729, 0
      %v1740 = vsel %vm1735, %v1730, 0
      %1742 = vmatprep.subr.mxu0 0.0
      %1743 = vmatpush1.msra.mxu0 %v58
      %1744 = vmatprep.subr.mxu0 0.0
      %1745 = vmatpush1.msra.mxu0 %v59
      %1746 = vmatprep.subr.mxu0 0.0
      %1747 = vmatpush1.msra.mxu0 %v60
      %1748 = vmatprep.subr.mxu0 0.0
      %1749 = vmatpush1.msra.mxu0 %v61
      %1750 = vmatprep.subr.mxu0 0.0
      %1751 = vmatpush1.msra.mxu0 %v62
      %1752 = vmatprep.subr.mxu0 0.0
      %1753 = vmatpush1.msra.mxu0 %v63
      %1754 = vmatprep.subr.mxu0 0.0
      %1755 = vmatpush1.msra.mxu0 %v64
      %1756 = vmatprep.subr.mxu0 0.0
      %1757 = vmatpush1.msra.mxu0 %v65
      %1758 = vmatprep.subr.mxu0 0.0
      %1759 = vmatpush1.msra.mxu0 0.0
      %1760 = vmatprep.subr.mxu0 0.0
      %1761 = vmatpush1.msra.mxu0 0.0
      %1762 = vmatprep.subr.mxu0 0.0
      %1763 = vmatpush1.msra.mxu0 0.0
      %1764 = vmatprep.subr.mxu0 0.0
      %1765 = vmatpush1.msra.mxu0 0.0
      %1766 = vmatprep.subr.mxu0 0.0
      %1767 = vmatpush1.msra.mxu0 0.0
      %1768 = vmatprep.subr.mxu0 0.0
      %1769 = vmatpush1.msra.mxu0 0.0
      %1770 = vmatprep.subr.mxu0 0.0
      %1771 = vmatpush1.msra.mxu0 0.0
      %1772 = vmatprep.subr.mxu0 0.0
      %1773 = vmatpush1.msra.mxu0 0.0
      %1774 = vmatprep.subr.mxu0 0.0
      %1775 = vmatpush1.msra.mxu0 0.0
      %1776 = vmatprep.subr.mxu0 0.0
      %1777 = vmatpush1.msra.mxu0 0.0
      %1778 = vmatprep.subr.mxu0 0.0
      %1779 = vmatpush1.msra.mxu0 0.0
      %1780 = vmatprep.subr.mxu0 0.0
      %1781 = vmatpush1.msra.mxu0 0.0
      %1782 = vmatprep.subr.mxu0 0.0
      %1783 = vmatpush1.msra.mxu0 0.0
      %1784 = vmatprep.subr.mxu0 0.0
      %1785 = vmatpush1.msra.mxu0 0.0
      %1786 = vmatprep.subr.mxu0 0.0
      %1787 = vmatpush1.msra.mxu0 0.0
      %1788 = vmatprep.subr.mxu0 0.0
      %1789 = vmatpush1.msra.mxu0 0.0
      %1790 = vmatprep.subr.mxu0 0.0
      %1791 = vmatpush1.msra.mxu0 0.0
      %1792 = vmatprep.subr.mxu0 0.0
      %1793 = vmatpush1.msra.mxu0 0.0
      %1794 = vmatprep.subr.mxu0 0.0
      %1795 = vmatpush1.msra.mxu0 0.0
      %1796 = vmatprep.subr.mxu0 0.0
      %1797 = vmatpush1.msra.mxu0 0.0
      %1798 = vmatprep.subr.mxu0 0.0
      %1799 = vmatpush1.msra.mxu0 0.0
      %1800 = vmatprep.subr.mxu0 0.0
      %1801 = vmatpush1.msra.mxu0 0.0
      %1802 = vmatprep.subr.mxu0 0.0
      %1803 = vmatpush1.msra.mxu0 0.0
      %1804 = vmatprep.subr.mxu0 0.0
      %1805 = vmatpush1.msra.mxu0 0.0
      %1806 = vmatprep.mubr.f32.mxu0 0.0
      %1807 = vmatmul.mubr.f32.gmra.mrb[0].mxu0 %v1737
      %v1808 = vpop.f32.mrb[0].mxu0
      %v1809 = vadd.f32 %v1734, %v1808
      %v1810 = vpop.f32.mrb[0].mxu0
      %1811 = vmatprep.mubr.f32.mxu0 0.0
      %1812 = vmatmul.mubr.f32.gmra.mrb[0].mxu0 %v1740
      %v1813 = vpop.f32.mrb[0].mxu0
      %v1814 = vadd.f32 %v1734, %v1813
      %v1815 = vpop.f32.mrb[0].mxu0
      %1816 = vdwg.mxu0
      %v1817 = vadd.f32 %v1640, %v1809
      %v1818 = vadd.f32 %v1641, %v1814
      %v1819 = vsel %vm83, %v1817, 0.0
      %1820 = vadd.xlane.f32.xlu0 %v1819
      %v1821 = vpop.xlane.xlu0 %1820
      %v1822 = vsel %vm83, %v1818, 0.0
      %1823 = vadd.xlane.f32.xlu0 %v1822
      %v1824 = vpop.xlane.xlu0 %1823
      %v1825 = vmul.f32 %v1821, %v1609
      %v1826 = vmul.f32 %v1824, %v1609
      %v1827 = vsub.f32 %v1817, %v1825
      %v1828 = vsub.f32 %v1818, %v1826
      %v1829 = vmul.f32 %v1827, %v1827
      %v1830 = vmul.f32 %v1828, %v1828
      %v1831 = vsel %vm83, %v1829, 0.0
      %1832 = vadd.xlane.f32.xlu0 %v1831
      %v1833 = vpop.xlane.xlu0 %1832
      %v1834 = vsel %vm83, %v1830, 0.0
      %1835 = vadd.xlane.f32.xlu0 %v1834
      %v1836 = vpop.xlane.xlu0 %1835
      %v1837 = vmul.f32 %v1833, %v1609
      %v1838 = vmul.f32 %v1836, %v1609
      %v1839 = vadd.f32 %v1837, 1e-05
      %v1840 = vadd.f32 %v1838, 1e-05
      %v1841 = vrsqrt.pop %v1839
      %v1842 = vrsqrt.pop %v1840
      %v1843 = vmul.f32 %v1827, %v1841
      %v1844 = vmul.f32 %v1828, %v1842
      %v1845 = vlaneseq
      %v1846 = vshrl.u32 %v1845, 7
      %v1847 = vsub.s32 4, %v1846
      %v1848 = vrot.slane %v66, %v1847
      %v1849 = vmul.f32 %v1843, %v1848
      %v1850 = vmul.f32 %v1844, %v1848
      %v1851 = vlaneseq
      %v1852 = vshrl.u32 %v1851, 7
      %v1853 = vsub.s32 5, %v1852
      %v1854 = vrot.slane %v66, %v1853
      %v1855 = vadd.f32 %v1849, %v1854
      %v1856 = vadd.f32 %v1850, %v1854
    $region42: #{transformer_encoder.1} parent=1 // loop_footer
      %s74 = sadd.s32 1, %s70
    $region43: #{transformer_encoder.1} parent=1 // loop_footer_branch
      %69 = sbr.rel target = $region39
    $region44: #{transformer_encoder.1} parent=1 // loop_exit
      _
    %vm1857 = vcmask 261120
    %1858 = vst.msk [vmem:[#allocation5] sm:$0xff] %vm1857, %v75
    %1859 = vst.msk [vmem:[#allocation5 + $0x8] sm:$0xff] %vm1857, %v76
    // Predicated region
    $region45: #{transformer_encoder.1} parent=1 // pred_check
      _
    $region46: #{transformer_encoder.1} parent=1 // pred_check_branch
      %1861 = sbr.rel (0) target = $region48
    $region47: #{transformer_encoder.1} parent=1 // pred_region
      %s1863 = ssub.s32 256, 256
      %1864 = vsyncadd [#allocation4], %s1863
      %s1865 = sshll.u32 [#allocation5], 4
      %s1866 = int_to_ptr.vmem [resolvable:$true] %s1865
      %1871 = dma.vmem_to_hbm [thread:$0]  %s1866, 256, %s8, [#allocation4], 128, 128, 8
    $region48: #{transformer_encoder.1} parent=1 // pred_fallthru
      _
    // Predicated region
    $region49: #{transformer_encoder.1} parent=1 // pred_check
      _
    $region50: #{transformer_encoder.1} parent=1 // pred_check_branch
      %1873 = sbr.rel (0) target = $region52
    $region51: #{transformer_encoder.1} parent=1 // pred_region
      %1874 = dma.done [#allocation4], 256
    $region52: #{transformer_encoder.1} parent=1 // pred_fallthru
      _
    %1875 = vsyncpa [#allocation3], 1
    %1876 = vsyncpa [#allocation4], 1

</llo_original>
